<compile_context>
chip_gen: v7x
topology: tpu7x:2x2x1
jax: 0.10.0
libtpu: 0.0.40
codegen_flags: <defaults>
</compile_context>

<pallas_src>
import functools

import jax
import jax.numpy as jnp
from jax import lax
from jax.experimental import pallas as pl
from jax.experimental.pallas import tpu as pltpu


def _gated_conv2d_kernel(x_ref, w_ref, b_ref, out_ref, *, KH, KW, stride,
                         dilation, padding, Ho, Wo, Cout):
    """One grid step = one batch element.

    x_ref  : (1, Cin, H, W)            unpadded NCHW image
    w_ref  : (2*Cout, KH*KW*Cin)       rows [0:Cout) -> conv, [Cout:2Cout) -> mask
    b_ref  : (2*Cout, 1)               fused biases (f32)
    out_ref: (1, Cout, Ho*Wo)          lane-dense flattened-spatial output
    """
    x = x_ref[0]                                   # (Cin, H, W), model dtype
    Cin, H, W = x.shape

    # Replication ('edge') padding done in VMEM — no padded HBM copy.
    if padding > 0:
        x = jnp.concatenate([x[:, :, :1]] * padding + [x]
                            + [x[:, :, W - 1:]] * padding, axis=2)
        x = jnp.concatenate([x[:, :1, :]] * padding + [x]
                            + [x[:, H - 1:, :]] * padding, axis=1)

    # im2col: gather the KH*KW taps along the (cheap) leading axis, then one
    # reshape to flatten spatial into the lane dimension.
    taps = []
    for kh in range(KH):
        for kw in range(KW):
            h0 = kh * dilation
            w0 = kw * dilation
            patch = lax.slice(
                x, (0, h0, w0),
                (Cin, h0 + (Ho - 1) * stride + 1, w0 + (Wo - 1) * stride + 1),
                (1, stride, stride))               # (Cin, Ho, Wo)
            taps.append(patch)
    patches = jnp.concatenate(taps, axis=0)        # (KH*KW*Cin, Ho, Wo)
    patches = patches.reshape(KH * KW * Cin, Ho * Wo)

    # Single fused MXU matmul for conv + mask, f32 accumulation.
    y = jnp.dot(w_ref[...], patches,
                preferred_element_type=jnp.float32)        # (2*Cout, Ho*Wo)
    y = y + b_ref[...]

    conv = y[:Cout]
    mask = y[Cout:]
    # ELU(alpha=1.0), clamped so exp never sees large positive inputs.
    elu_neg = jnp.exp(jnp.minimum(conv, 0.0)) - 1.0
    conv = jnp.where(conv > 0, conv, elu_neg)
    gated = conv * jax.nn.sigmoid(mask)

    out_ref[0] = gated.astype(out_ref.dtype)


def gated_conv2d(x_nchw, params, *, kernel_size, stride=1, padding=0,
                 dilation=1):
    """Forward pass of GatedConv2d (replicate pad, ELU, no norm). NCHW in/out."""
    wc, bc, wdw, bdw, wpw, bpw = params
    N, Cin, H, W = x_nchw.shape
    KH = KW = kernel_size
    Cout = wc.shape[-1]

    Hp, Wp = H + 2 * padding, W + 2 * padding
    Ho = (Hp - dilation * (KH - 1) - 1) // stride + 1
    Wo = (Wp - dilation * (KW - 1) - 1) // stride + 1
    KKC = KH * KW * Cin

    # ---- weight preparation (tiny tensors, exact linear-map composition) ----
    hi = lax.Precision.HIGHEST
    # standard conv weight -> (Cout, KH*KW*Cin), column order (kh, kw, c)
    wc_mat = wc.reshape(KKC, Cout).T
    # depthwise weight -> block matrix (Cin, KH*KW*Cin):
    #   blk[c, t*Cin + c'] = wdw[t, c] * delta(c, c')
    wdw_t = wdw.reshape(KH * KW, Cin)                        # [tap, channel]
    eye = jnp.eye(Cin, dtype=wdw.dtype)
    wdw_blk = (eye[:, None, :] * wdw_t.T[:, :, None]).reshape(Cin, KKC)
    # compose depthwise + pointwise:  mask = (wpw.T @ blk) @ patches + bias
    wm_mat = jnp.dot(wpw.T, wdw_blk, precision=hi)           # (Cout, KKC)
    bm = (jnp.dot(wpw.T, bdw.reshape(Cin, 1), precision=hi)
          + bpw.reshape(Cout, 1))                            # (Cout, 1)

    w_all = jnp.concatenate([wc_mat, wm_mat], axis=0).astype(x_nchw.dtype)
    b_all = jnp.concatenate([bc.reshape(Cout, 1), bm], axis=0
                            ).astype(jnp.float32)            # (2*Cout, 1)

    kern = functools.partial(
        _gated_conv2d_kernel, KH=KH, KW=KW, stride=stride, dilation=dilation,
        padding=padding, Ho=Ho, Wo=Wo, Cout=Cout)

    itemsize = jnp.dtype(x_nchw.dtype).itemsize
    cost = pl.CostEstimate(
        flops=2 * N * (2 * Cout) * KKC * Ho * Wo,
        transcendentals=2 * N * Cout * Ho * Wo,
        bytes_accessed=(N * Cin * H * W + N * Cout * Ho * Wo) * itemsize
                       + (2 * Cout * KKC + 2 * Cout) * 4)

    out_flat = pl.pallas_call(
        kern,
        out_shape=jax.ShapeDtypeStruct((N, Cout, Ho * Wo), x_nchw.dtype),
        grid_spec=pltpu.PrefetchScalarGridSpec(
            num_scalar_prefetch=0,
            grid=(N,),
            in_specs=[
                pl.BlockSpec((1, Cin, H, W), lambda n: (n, 0, 0, 0)),
                pl.BlockSpec(w_all.shape, lambda n: (0, 0)),
                pl.BlockSpec(b_all.shape, lambda n: (0, 0)),
            ],
            out_specs=pl.BlockSpec((1, Cout, Ho * Wo), lambda n: (n, 0, 0)),
        ),
        compiler_params=pltpu.CompilerParams(
            dimension_semantics=("parallel",)),
        cost_estimate=cost,
    )(x_nchw, w_all, b_all)

    # Contiguous reshape (free) back to NCHW.
    return out_flat.reshape(N, Cout, Ho, Wo)


def init_params(key, in_channels, out_channels, kernel_size):
    """Deterministic synthetic parameters (shapes match the PyTorch module)."""
    k = kernel_size
    ks = jax.random.split(key, 6)
    scale = 0.2
    # nn.Conv2d(in, out, k): weight (out, in, k, k) -> stored as (k, k, in, out)
    wc = scale * jax.random.normal(ks[0], (k, k, in_channels, out_channels),
                                   jnp.float32)
    bc = scale * jax.random.normal(ks[1], (1, out_channels), jnp.float32)
    # depthwise Conv2d(in, in, k, groups=in): weight (in, 1, k, k)
    #   -> stored as (k, k, 1, in)
    wdw = scale * jax.random.normal(ks[2], (k, k, 1, in_channels), jnp.float32)
    bdw = scale * jax.random.normal(ks[3], (1, in_channels), jnp.float32)
    # pointwise Conv2d(in, out, 1): weight (out, in, 1, 1) -> (in, out)
    wpw = scale * jax.random.normal(ks[4], (in_channels, out_channels),
                                    jnp.float32)
    bpw = scale * jax.random.normal(ks[5], (1, out_channels), jnp.float32)
    return wc, bc, wdw, bdw, wpw, bpw


def reference_gated_conv2d(x_nchw, params, *, kernel_size, stride=1,
                           padding=0, dilation=1):
    """Pure-JAX reference (lax.conv) for correctness checking."""
    wc, bc, wdw, bdw, wpw, bpw = params
    Cin = x_nchw.shape[1]
    xp = jnp.pad(x_nchw, ((0, 0), (0, 0), (padding, padding),
                          (padding, padding)), mode='edge')
    hi = jax.lax.Precision.HIGHEST
    dn = ('NCHW', 'OIHW', 'NCHW')
    # standard conv
    w_oihw = jnp.transpose(wc, (3, 2, 0, 1))
    conv = lax.conv_general_dilated(xp, w_oihw, (stride, stride), 'VALID',
                                    rhs_dilation=(dilation, dilation),
                                    dimension_numbers=dn, precision=hi)
    conv = conv + bc[0][None, :, None, None]
    conv = jax.nn.elu(conv)
    # depthwise conv
    wdw_oihw = jnp.transpose(wdw, (3, 2, 0, 1))        # (Cin, 1, k, k)
    dw = lax.conv_general_dilated(xp, wdw_oihw, (stride, stride), 'VALID',
                                  rhs_dilation=(dilation, dilation),
                                  feature_group_count=Cin,
                                  dimension_numbers=dn, precision=hi)
    dw = dw + bdw[0][None, :, None, None]
    # pointwise 1x1 conv
    wpw_oihw = jnp.transpose(wpw, (1, 0))[:, :, None, None]
    mask = lax.conv_general_dilated(dw, wpw_oihw, (1, 1), 'VALID',
                                    dimension_numbers=dn, precision=hi)
    mask = mask + bpw[0][None, :, None, None]
    return conv * jax.nn.sigmoid(mask)


if __name__ == "__main__":
    N, Cin, H, W = 2, 4, 16, 16
    Cout, K, stride, padding, dilation = 8, 3, 1, 1, 1

    key = jax.random.PRNGKey(0)
    kx, kp = jax.random.split(key)
    x = jax.random.normal(kx, (N, Cin, H, W), jnp.float32)
    params = init_params(kp, Cin, Cout, K)

    out = gated_conv2d(x, params, kernel_size=K, stride=stride,
                       padding=padding, dilation=dilation)
    out = jax.block_until_ready(out)

    ref = reference_gated_conv2d(x, params, kernel_size=K, stride=stride,
                                 padding=padding, dilation=dilation)
    assert out.shape == (N, Cout, H, W), out.shape
    assert jnp.allclose(out, ref, atol=5e-4, rtol=5e-4), float(
        jnp.max(jnp.abs(out - ref)))

    print("KERNEL_OK")
</pallas_src>

<mosaic_0001>
module attributes {stable_mosaic.version = 11 : i64} {
  func.func @_gated_conv2d_kernel(%arg0: i32, %arg1: memref<1x4x16x16xf32, #tpu.memory_space<vmem>>, %arg2: memref<16x36xf32, #tpu.memory_space<vmem>>, %arg3: memref<16x1xf32, #tpu.memory_space<vmem>>, %arg4: memref<1x8x256xf32, #tpu.memory_space<vmem>>) attributes {dimension_semantics = [#tpu.dimension_semantics<parallel>], iteration_bounds = array<i64: 2>, scalar_prefetch = 0 : i64, scratch_operands = 0 : i64, tpu.core_type = #tpu.core_type<tc>, window_params = [{transform_indices = @transform_0, window_bounds = array<i64: 1, 4, 16, 16>}, {pipeline_mode = #tpu.pipeline_mode<synchronous>, transform_indices = @transform_1, window_bounds = array<i64: 16, 36>}, {pipeline_mode = #tpu.pipeline_mode<synchronous>, transform_indices = @transform_2, window_bounds = array<i64: 16, 1>}, {transform_indices = @transform_3, window_bounds = array<i64: 1, 8, 256>}]} {
    %c0 = arith.constant 0 : index
    %c0_0 = arith.constant 0 : index
    %c0_1 = arith.constant 0 : index
    %c0_2 = arith.constant 0 : index
    %0 = vector.load %arg1[%c0, %c0_0, %c0_1, %c0_2] : memref<1x4x16x16xf32, #tpu.memory_space<vmem>>, vector<1x4x16x16xf32>
    %1 = vector.shape_cast %0 : vector<1x4x16x16xf32> to vector<4x16x16xf32>
    %2 = vector.extract_strided_slice %1 {offsets = [0, 0, 0], sizes = [4, 16, 1], strides = [1, 1, 1]} : vector<4x16x16xf32> to vector<4x16x1xf32>
    %3 = vector.extract_strided_slice %1 {offsets = [0, 0, 15], sizes = [4, 16, 1], strides = [1, 1, 1]} : vector<4x16x16xf32> to vector<4x16x1xf32>
    %4 = tpu.concatenate %2, %1, %3 in 2 : vector<4x16x1xf32>, vector<4x16x16xf32>, vector<4x16x1xf32> -> vector<4x16x18xf32>
    %5 = vector.extract_strided_slice %4 {offsets = [0, 0, 0], sizes = [4, 1, 18], strides = [1, 1, 1]} : vector<4x16x18xf32> to vector<4x1x18xf32>
    %6 = vector.extract_strided_slice %4 {offsets = [0, 15, 0], sizes = [4, 1, 18], strides = [1, 1, 1]} : vector<4x16x18xf32> to vector<4x1x18xf32>
    %7 = tpu.concatenate %5, %4, %6 in 1 : vector<4x1x18xf32>, vector<4x16x18xf32>, vector<4x1x18xf32> -> vector<4x18x18xf32>
    %8 = vector.extract_strided_slice %7 {offsets = [0, 0, 0], sizes = [4, 16, 16], strides = [1, 1, 1]} : vector<4x18x18xf32> to vector<4x16x16xf32>
    %9 = vector.extract_strided_slice %7 {offsets = [0, 0, 1], sizes = [4, 16, 16], strides = [1, 1, 1]} : vector<4x18x18xf32> to vector<4x16x16xf32>
    %10 = vector.extract_strided_slice %7 {offsets = [0, 0, 2], sizes = [4, 16, 16], strides = [1, 1, 1]} : vector<4x18x18xf32> to vector<4x16x16xf32>
    %11 = vector.extract_strided_slice %7 {offsets = [0, 1, 0], sizes = [4, 16, 16], strides = [1, 1, 1]} : vector<4x18x18xf32> to vector<4x16x16xf32>
    %12 = vector.extract_strided_slice %7 {offsets = [0, 1, 1], sizes = [4, 16, 16], strides = [1, 1, 1]} : vector<4x18x18xf32> to vector<4x16x16xf32>
    %13 = vector.extract_strided_slice %7 {offsets = [0, 1, 2], sizes = [4, 16, 16], strides = [1, 1, 1]} : vector<4x18x18xf32> to vector<4x16x16xf32>
    %14 = vector.extract_strided_slice %7 {offsets = [0, 2, 0], sizes = [4, 16, 16], strides = [1, 1, 1]} : vector<4x18x18xf32> to vector<4x16x16xf32>
    %15 = vector.extract_strided_slice %7 {offsets = [0, 2, 1], sizes = [4, 16, 16], strides = [1, 1, 1]} : vector<4x18x18xf32> to vector<4x16x16xf32>
    %16 = vector.extract_strided_slice %7 {offsets = [0, 2, 2], sizes = [4, 16, 16], strides = [1, 1, 1]} : vector<4x18x18xf32> to vector<4x16x16xf32>
    %17 = tpu.concatenate %8, %9, %10, %11, %12, %13, %14, %15, %16 in 0 : vector<4x16x16xf32>, vector<4x16x16xf32>, vector<4x16x16xf32>, vector<4x16x16xf32>, vector<4x16x16xf32>, vector<4x16x16xf32>, vector<4x16x16xf32>, vector<4x16x16xf32>, vector<4x16x16xf32> -> vector<36x16x16xf32>
    %18 = vector.shape_cast %17 : vector<36x16x16xf32> to vector<36x256xf32>
    %c0_3 = arith.constant 0 : index
    %c0_4 = arith.constant 0 : index
    %19 = vector.load %arg2[%c0_3, %c0_4] : memref<16x36xf32, #tpu.memory_space<vmem>>, vector<16x36xf32>
    %cst = arith.constant dense<0.000000e+00> : vector<16x256xf32>
    %20 = tpu.matmul %19, %18, %cst {dimension_numbers = #tpu.dot_dimension_numbers<[1], [0], [0], [1], [0, 0, 1, 1], [], []>} : vector<16x36xf32>, vector<36x256xf32>, vector<16x256xf32> -> vector<16x256xf32>
    %c0_5 = arith.constant 0 : index
    %c0_6 = arith.constant 0 : index
    %21 = vector.load %arg3[%c0_5, %c0_6] : memref<16x1xf32, #tpu.memory_space<vmem>>, vector<16x1xf32>
    %22 = vector.broadcast %21 : vector<16x1xf32> to vector<16x256xf32>
    %23 = arith.addf %20, %22 : vector<16x256xf32>
    %24 = vector.extract_strided_slice %23 {offsets = [0, 0], sizes = [8, 256], strides = [1, 1]} : vector<16x256xf32> to vector<8x256xf32>
    %25 = vector.extract_strided_slice %23 {offsets = [8, 0], sizes = [8, 256], strides = [1, 1]} : vector<16x256xf32> to vector<8x256xf32>
    %cst_7 = arith.constant 0.000000e+00 : f32
    %26 = vector.broadcast %cst_7 : f32 to vector<8x256xf32>
    %27 = arith.minimumf %24, %26 : vector<8x256xf32>
    %28 = math.exp %27 : vector<8x256xf32>
    %cst_8 = arith.constant 1.000000e+00 : f32
    %29 = vector.broadcast %cst_8 : f32 to vector<8x256xf32>
    %30 = arith.subf %28, %29 : vector<8x256xf32>
    %cst_9 = arith.constant 0.000000e+00 : f32
    %31 = vector.broadcast %cst_9 : f32 to vector<8x256xf32>
    %32 = arith.cmpf ogt, %24, %31 : vector<8x256xf32>
    %33 = arith.select %32, %24, %30 : vector<8x256xi1>, vector<8x256xf32>
    %34 = arith.negf %25 : vector<8x256xf32>
    %35 = math.exp %34 : vector<8x256xf32>
    %cst_10 = arith.constant 1.000000e+00 : f32
    %36 = vector.broadcast %cst_10 : f32 to vector<8x256xf32>
    %37 = arith.addf %36, %35 : vector<8x256xf32>
    %38 = arith.divf %36, %37 : vector<8x256xf32>
    %39 = arith.mulf %33, %38 : vector<8x256xf32>
    %c0_11 = arith.constant 0 : index
    %c0_12 = arith.constant 0 : index
    %c0_13 = arith.constant 0 : index
    %40 = vector.load %arg4[%c0_11, %c0_12, %c0_13] : memref<1x8x256xf32, #tpu.memory_space<vmem>>, vector<1x8x256xf32>
    %41 = vector.shape_cast %40 : vector<1x8x256xf32> to vector<8x256xf32>
    %42 = vector.shape_cast %39 : vector<8x256xf32> to vector<1x8x256xf32>
    tpu.vector_store %arg4[%c0_11, %c0_12, %c0_13], %42 {strides = array<i32>} : memref<1x8x256xf32, #tpu.memory_space<vmem>>, vector<1x8x256xf32>,
    return
  }
  func.func @transform_0(%arg0: i32) -> (i32, i32, i32, i32) {
    %c0_i32 = arith.constant 0 : i32
    %c0_i32_0 = arith.constant 0 : i32
    %c0_i32_1 = arith.constant 0 : i32
    %c0_i32_2 = arith.constant 0 : i32
    return %arg0, %c0_i32, %c0_i32_0, %c0_i32_1 : i32, i32, i32, i32
  }
  func.func @transform_1(%arg0: i32) -> (i32, i32) {
    %c0_i32 = arith.constant 0 : i32
    %c0_i32_0 = arith.constant 0 : i32
    %c0_i32_1 = arith.constant 0 : i32
    return %c0_i32, %c0_i32_0 : i32, i32
  }
  func.func @transform_2(%arg0: i32) -> (i32, i32) {
    %c0_i32 = arith.constant 0 : i32
    %c0_i32_0 = arith.constant 0 : i32
    %c0_i32_1 = arith.constant 0 : i32
    return %c0_i32, %c0_i32_0 : i32, i32
  }
  func.func @transform_3(%arg0: i32) -> (i32, i32, i32) {
    %c0_i32 = arith.constant 0 : i32
    %c0_i32_0 = arith.constant 0 : i32
    %c0_i32_1 = arith.constant 0 : i32
    return %arg0, %c0_i32, %c0_i32_0 : i32, i32, i32
  }
}

</mosaic_0001>

<llo_original>
// kernel: tpu_custom_call.1
$region0: #{tpu_custom_call.1}
  #allocation0 [shape = 'u32[]', space=smem, size = 0x4, offset = 0x4, fixed_abs, tag = 'smem constant byte address 0x4 - core index']
  #allocation1 [shape = 'u32[144,128]{1,0:T(1,128)}', space=vmem, size = 0x12000, scoped, tag = 'internal scratch']
  %s0 = inlined_call_operand.hbm [shape: f32[2,4,16,16], index: 0, kind: input, shape index: {}]
  %s1 = inlined_call_operand.vmem [shape: f32[16,36], index: 1, kind: input, shape index: {}]
  %s2 = inlined_call_operand.vmem [shape: f32[16,1], index: 2, kind: input, shape index: {}]
  %s3 = inlined_call_operand.hbm [shape: f32[2,8,256], index: 3, kind: output, shape index: {}]
  %s4 = sld [smem:[#allocation0]]
  $region49: #{tpu_custom_call.1} parent=0
    _
  %s6 = ssub.s32 1, %s4
  %s7 = scalar_select 0, %s6, %s4
  $region1: #{tpu_custom_call.1} parent=0
    #allocation2 [shape = 'u8[65536]{0}', space=vmem, size = 0x10000, scoped, tag = 'input window, operand 0']
    #allocation3 [shape = 's32[2]{0}', space=sflag, size = 0x8, scoped, tag = 'scoped memory for tpu_custom_call.1']
    #allocation4 [shape = 's32[2]{0}', space=sflag, size = 0x8, scoped, tag = 'scoped memory for tpu_custom_call.1']
    #allocation5 [shape = 'u8[16384]{0}', space=vmem, size = 0x4000, scoped, tag = 'output window, operand 0']
    %8 = vsyncpa [#allocation3], 0
    %s9 = scalar_lea.sflag [#allocation3], 1
    %10 = vsyncpa %s9, 0
    %11 = vsyncpa [#allocation4], 0
    %s12 = scalar_lea.sflag [#allocation4], 1
    %13 = vsyncpa %s12, 0
    loop: start=0, step=1, limit=4
    $region2: #{tpu_custom_call.1} parent=1 // loop_pre_header
      _
    $region3: #{tpu_custom_call.1} parent=1 // loop_header
      %s15 = sphi 0, %s19
      %p16 = scmp.ge.s32.totalorder %s15, 4
      %s25 = sphi 0, %s27
      %s28 = sphi 0, %s25
      %s29 = sphi 0, %s28
      %s45 = sphi 0, %s29
      %s49 = sphi 0, %s49
      %s51 = sphi 0, %s49
      %s52 = sphi 0, %s51
      %s66 = sphi 0, %s52
      %s70 = sphi 0, %s70
      %s72 = sphi 0, %s70
      %s73 = sphi 0, %s72
      %s87 = sphi 0, %s73
      %s93 = sphi 0, %s95
      %s96 = sphi 0, %s93
      %s97 = sphi 0, %s96
      %s113 = sphi 0, %s97
    $region4: #{tpu_custom_call.1} parent=1 // loop_header_branch
      %18 = sbr.rel (%p16) target = $region8
    $region5: #{tpu_custom_call.1} parent=1 // loop_body
      %s20 = ssub.s32 %s15, 1
      %s21 = ssub.s32 %s15, 2
      %s22 = sadd.s32 %s15, 1
      %s23 = ssub.s32 %s15, %s22
      %p24 = scmp.eq.s32.totalorder %s23, 0
      %s26 = sadd.s32 %s25, 1
      %s27 = scalar_select %p24, %s25, %s26
      %p30 = pneg %p24
      %p31 = scmp.eq.s32.totalorder %s15, 1
      %p32 = por %p30, %p31
      %p33 = scmp.ne.s32.totalorder %s25, %s28
      %p34 = scmp.eq.s32.totalorder %s15, 0
      %p35 = por %p33, %p34
      %p36 = scmp.ne.s32.totalorder %s25, %s28
      %p37 = scmp.eq.s32.totalorder %s20, 1
      %p38 = por %p36, %p37
      %p39 = scmp.ne.s32.totalorder %s28, %s29
      %p40 = scmp.eq.s32.totalorder %s20, 0
      %p41 = por %p39, %p40
      %p42 = scmp.ne.s32.totalorder %s28, %s29
      %p43 = scmp.eq.s32.totalorder %s21, 1
      %p44 = por %p42, %p43
      %p46 = scmp.ne.s32.totalorder %s29, %s45
      %p47 = scmp.eq.s32.totalorder %s21, 0
      %p48 = por %p46, %p47
      %s50 = sadd.s32 %s49, 1
      %p53 = scmp.eq.s32.totalorder %s15, 1
      %p54 = scmp.ne.s32.totalorder %s49, %s51
      %p55 = scmp.eq.s32.totalorder %s15, 0
      %p56 = por %p54, %p55
      %p57 = scmp.ne.s32.totalorder %s49, %s51
      %p58 = scmp.eq.s32.totalorder %s20, 1
      %p59 = por %p57, %p58
      %p60 = scmp.ne.s32.totalorder %s51, %s52
      %p61 = scmp.eq.s32.totalorder %s20, 0
      %p62 = por %p60, %p61
      %p63 = scmp.ne.s32.totalorder %s51, %s52
      %p64 = scmp.eq.s32.totalorder %s21, 1
      %p65 = por %p63, %p64
      %p67 = scmp.ne.s32.totalorder %s52, %s66
      %p68 = scmp.eq.s32.totalorder %s21, 0
      %p69 = por %p67, %p68
      %s71 = sadd.s32 %s70, 1
      %p74 = scmp.eq.s32.totalorder %s15, 1
      %p75 = scmp.ne.s32.totalorder %s70, %s72
      %p76 = scmp.eq.s32.totalorder %s15, 0
      %p77 = por %p75, %p76
      %p78 = scmp.ne.s32.totalorder %s70, %s72
      %p79 = scmp.eq.s32.totalorder %s20, 1
      %p80 = por %p78, %p79
      %p81 = scmp.ne.s32.totalorder %s72, %s73
      %p82 = scmp.eq.s32.totalorder %s20, 0
      %p83 = por %p81, %p82
      %p84 = scmp.ne.s32.totalorder %s72, %s73
      %p85 = scmp.eq.s32.totalorder %s21, 1
      %p86 = por %p84, %p85
      %p88 = scmp.ne.s32.totalorder %s73, %s87
      %p89 = scmp.eq.s32.totalorder %s21, 0
      %p90 = por %p88, %p89
      %s91 = ssub.s32 %s15, %s22
      %p92 = scmp.eq.s32.totalorder %s91, 0
      %s94 = sadd.s32 %s93, 1
      %s95 = scalar_select %p92, %s93, %s94
      %p98 = pneg %p92
      %p99 = scmp.eq.s32.totalorder %s15, 1
      %p100 = por %p98, %p99
      %p101 = scmp.ne.s32.totalorder %s93, %s96
      %p102 = scmp.eq.s32.totalorder %s15, 0
      %p103 = por %p101, %p102
      %p104 = scmp.ne.s32.totalorder %s93, %s96
      %p105 = scmp.eq.s32.totalorder %s20, 1
      %p106 = por %p104, %p105
      %p107 = scmp.ne.s32.totalorder %s96, %s97
      %p108 = scmp.eq.s32.totalorder %s20, 0
      %p109 = por %p107, %p108
      %p110 = scmp.ne.s32.totalorder %s96, %s97
      %p111 = scmp.eq.s32.totalorder %s21, 1
      %p112 = por %p110, %p111
      %p114 = scmp.ne.s32.totalorder %s97, %s113
      %p115 = scmp.eq.s32.totalorder %s21, 0
      %p116 = por %p114, %p115
      %p117 = scmp.le.s32.totalorder 1, %s15
      %p118 = scmp.lt.s32.totalorder %s15, 3
      %p119 = pnand %p117, %p118
      %p120 = pneg %p119
      // Predicated region
      $region9: #{tpu_custom_call.1} parent=5 // pred_check
        _
      $region10: #{tpu_custom_call.1} parent=5 // pred_check_branch
        %122 = sbr.rel (%p119) target = $region12
      $region11: #{tpu_custom_call.1} parent=5 // pred_region
        %s123 = ssub.s32 %s15, 1
        // Predicated region
        $region13: #{tpu_custom_call.1} parent=11 // pred_check
          %p124 = pneg %p62
        $region14: #{tpu_custom_call.1} parent=11 // pred_check_branch
          %126 = sbr.rel (%p124) target = $region16
        $region15: #{tpu_custom_call.1} parent=11 // pred_region
          _
        $region16: #{tpu_custom_call.1} parent=11 // pred_fallthru
          _
        // Predicated region
        $region17: #{tpu_custom_call.1} parent=11 // pred_check
          %p127 = pneg %p83
        $region18: #{tpu_custom_call.1} parent=11 // pred_check_branch
          %129 = sbr.rel (%p127) target = $region20
        $region19: #{tpu_custom_call.1} parent=11 // pred_region
          _
        $region20: #{tpu_custom_call.1} parent=11 // pred_fallthru
          _
      $region12: #{tpu_custom_call.1} parent=5 // pred_fallthru
        _
      %p130 = scmp.lt.s32.totalorder %s15, 2
      // Predicated region
      $region21: #{tpu_custom_call.1} parent=5 // pred_check
        %p131 = pneg %p130
      $region22: #{tpu_custom_call.1} parent=5 // pred_check_branch
        %133 = sbr.rel (%p131) target = $region24
      $region23: #{tpu_custom_call.1} parent=5 // pred_region
        // Predicated region
        $region25: #{tpu_custom_call.1} parent=23 // pred_check
          %p134 = pneg %p35
        $region26: #{tpu_custom_call.1} parent=23 // pred_check_branch
          %136 = sbr.rel (%p134) target = $region28
        $region27: #{tpu_custom_call.1} parent=23 // pred_region
          %s137 = sand.u32 %s25, 1
          %s138 = scalar_lea.sflag [#allocation3], %s137
          %s139 = sand.u32 %s25, 1
          %s140 = smul.addr %s139, 64
          %s141 = scalar_lea.vmem [#allocation2], %s140
          %s143 = ssub.s32 1024, 1024
          %144 = vsyncadd %s138, %s143
          %s145 = smul.addr %s15, 8
          %s146 = smul.addr %s145, 128
          %s147 = scalar_lea.hbm %s0, %s146
          %s148 = sshll.u32 %s141, 4
          %s149 = int_to_ptr.vmem [resolvable:$true] %s148
          %154 = dma.hbm_to_vmem [thread:$0]  %s147, 1024, %s149, %s138, 128, 128, 8
        $region28: #{tpu_custom_call.1} parent=23 // pred_fallthru
          _
      $region24: #{tpu_custom_call.1} parent=5 // pred_fallthru
        _
      %p155 = scmp.le.s32.totalorder 1, %s15
      %p156 = scmp.lt.s32.totalorder %s15, 3
      %p157 = pnand %p155, %p156
      %p158 = pneg %p157
      // Predicated region
      $region29: #{tpu_custom_call.1} parent=5 // pred_check
        _
      $region30: #{tpu_custom_call.1} parent=5 // pred_check_branch
        %160 = sbr.rel (%p157) target = $region32
      $region31: #{tpu_custom_call.1} parent=5 // pred_region
        %s161 = ssub.s32 %s15, 1
        %s162 = sand.u32 %s28, 1
        %s163 = scalar_lea.sflag [#allocation3], %s162
        %s164 = sand.u32 %s28, 1
        %s165 = smul.addr %s164, 64
        %s166 = scalar_lea.vmem [#allocation2], %s165
        // Predicated region
        $region33: #{tpu_custom_call.1} parent=31 // pred_check
          %p167 = pneg %p41
        $region34: #{tpu_custom_call.1} parent=31 // pred_check_branch
          %169 = sbr.rel (%p167) target = $region36
        $region35: #{tpu_custom_call.1} parent=31 // pred_region
          %170 = dma.done %s163, 1024
        $region36: #{tpu_custom_call.1} parent=31 // pred_fallthru
          _
        %s171 = sand.u32 %s28, 1
        %s172 = scalar_lea.sflag [#allocation3], %s171
        %s173 = sand.u32 %s28, 1
        %s174 = smul.addr %s173, 64
        %s175 = scalar_lea.vmem [#allocation2], %s174
        %p176 = pneg %p41
        %p177 = pneg %p38
        %p178 = pneg %p62
        %p179 = pneg %p59
        %p180 = pneg %p83
        %p181 = pneg %p80
        %p182 = pneg %p109
        %p183 = pneg %p106
        %s184 = sand.u32 %s96, 1
        %s185 = scalar_lea.sflag [#allocation4], %s184
        %s186 = sand.u32 %s96, 1
        %s187 = smul.addr %s186, 16
        %s188 = scalar_lea.vmem [#allocation5], %s187
        %v189 = vld [vmem:[%s166] sm:$0xff]
        %v190 = vld [vmem:[%s166 + $0x8] sm:$0xff]
        %v191 = vld [vmem:[%s166 + $0x10] sm:$0xff]
        %v192 = vld [vmem:[%s166 + $0x18] sm:$0xff]
        %v193 = vld [vmem:[%s166 + $0x20] sm:$0xff]
        %v194 = vld [vmem:[%s166 + $0x28] sm:$0xff]
        %v195 = vld [vmem:[%s166 + $0x30] sm:$0xff]
        %v196 = vld [vmem:[%s166 + $0x38] sm:$0xff]
        %205 = vrot.lane.b32.xlu0 %v189, 1
        %v206 = vpop.permute.xlu0 %205
        %207 = vrot.lane.b32.xlu0 %v190, 1
        %v208 = vpop.permute.xlu0 %207
        %209 = vrot.lane.b32.xlu0 %v191, 1
        %v210 = vpop.permute.xlu0 %209
        %211 = vrot.lane.b32.xlu0 %v192, 1
        %v212 = vpop.permute.xlu0 %211
        %213 = vrot.lane.b32.xlu0 %v193, 1
        %v214 = vpop.permute.xlu0 %213
        %215 = vrot.lane.b32.xlu0 %v194, 1
        %v216 = vpop.permute.xlu0 %215
        %217 = vrot.lane.b32.xlu0 %v195, 1
        %v218 = vpop.permute.xlu0 %217
        %219 = vrot.lane.b32.xlu0 %v196, 1
        %v220 = vpop.permute.xlu0 %219
        %229 = vrot.lane.b32.xlu0 %v189, 2
        %v230 = vpop.permute.xlu0 %229
        %231 = vrot.lane.b32.xlu0 %v190, 2
        %v232 = vpop.permute.xlu0 %231
        %233 = vrot.lane.b32.xlu0 %v191, 2
        %v234 = vpop.permute.xlu0 %233
        %235 = vrot.lane.b32.xlu0 %v192, 2
        %v236 = vpop.permute.xlu0 %235
        %237 = vrot.lane.b32.xlu0 %v193, 2
        %v238 = vpop.permute.xlu0 %237
        %239 = vrot.lane.b32.xlu0 %v194, 2
        %v240 = vpop.permute.xlu0 %239
        %241 = vrot.lane.b32.xlu0 %v195, 2
        %v242 = vpop.permute.xlu0 %241
        %243 = vrot.lane.b32.xlu0 %v196, 2
        %v244 = vpop.permute.xlu0 %243
        %vm253 = vcmask 7168
        %v254 = vsel %vm253, %v189, %v206
        %v255 = vsel %vm253, %v190, %v208
        %v256 = vsel %vm253, %v191, %v210
        %v257 = vsel %vm253, %v192, %v212
        %v258 = vsel %vm253, %v193, %v214
        %v259 = vsel %vm253, %v194, %v216
        %v260 = vsel %vm253, %v195, %v218
        %v261 = vsel %vm253, %v196, %v220
        %vm262 = vcmask 138240
        %v263 = vsel %vm262, %v254, %v230
        %v264 = vsel %vm262, %v255, %v232
        %v265 = vsel %vm262, %v256, %v234
        %v266 = vsel %vm262, %v257, %v236
        %v267 = vsel %vm262, %v258, %v238
        %v268 = vsel %vm262, %v259, %v240
        %v269 = vsel %vm262, %v260, %v242
        %v270 = vsel %vm262, %v261, %v244
        %vm279 = vcmask 1040384
        %v280 = vrot.slane %v263, 7
        %v281 = vrot.slane %v264, 7
        %v282 = vsel %vm279, %v280, %v281
        %v283 = vrot.slane %v265, 7
        %v284 = vrot.slane %v266, 7
        %v285 = vsel %vm279, %v283, %v284
        %v286 = vrot.slane %v267, 7
        %v287 = vrot.slane %v268, 7
        %v288 = vsel %vm279, %v286, %v287
        %v289 = vrot.slane %v269, 7
        %v290 = vrot.slane %v270, 7
        %v291 = vsel %vm279, %v289, %v290
        %v304 = vrot.slane %v264, 6
        %v305 = vrot.slane %v266, 6
        %v306 = vrot.slane %v268, 6
        %v307 = vrot.slane %v270, 6
        %v312 = vsel %vm279, %v263, %v280
        %v313 = vsel %vm279, %v265, %v283
        %v314 = vsel %vm279, %v267, %v286
        %v315 = vsel %vm279, %v269, %v289
        %v316 = vsel %vm279, %v281, %v304
        %v317 = vsel %vm279, %v284, %v305
        %v318 = vsel %vm279, %v287, %v306
        %v319 = vsel %vm279, %v290, %v307
        %324 = vrot.lane.b32.xlu0 %v312, 127
        %v325 = vpop.permute.xlu0 %324
        %326 = vrot.lane.b32.xlu0 %v282, 127
        %v327 = vpop.permute.xlu0 %326
        %328 = vrot.lane.b32.xlu0 %v313, 127
        %v329 = vpop.permute.xlu0 %328
        %330 = vrot.lane.b32.xlu0 %v285, 127
        %v331 = vpop.permute.xlu0 %330
        %332 = vrot.lane.b32.xlu0 %v314, 127
        %v333 = vpop.permute.xlu0 %332
        %334 = vrot.lane.b32.xlu0 %v288, 127
        %v335 = vpop.permute.xlu0 %334
        %336 = vrot.lane.b32.xlu0 %v315, 127
        %v337 = vpop.permute.xlu0 %336
        %338 = vrot.lane.b32.xlu0 %v291, 127
        %v339 = vpop.permute.xlu0 %338
        %348 = vrot.lane.b32.xlu0 %v312, 126
        %v349 = vpop.permute.xlu0 %348
        %350 = vrot.lane.b32.xlu0 %v282, 126
        %v351 = vpop.permute.xlu0 %350
        %352 = vrot.lane.b32.xlu0 %v313, 126
        %v353 = vpop.permute.xlu0 %352
        %354 = vrot.lane.b32.xlu0 %v285, 126
        %v355 = vpop.permute.xlu0 %354
        %356 = vrot.lane.b32.xlu0 %v314, 126
        %v357 = vpop.permute.xlu0 %356
        %358 = vrot.lane.b32.xlu0 %v288, 126
        %v359 = vpop.permute.xlu0 %358
        %360 = vrot.lane.b32.xlu0 %v315, 126
        %v361 = vpop.permute.xlu0 %360
        %362 = vrot.lane.b32.xlu0 %v291, 126
        %v363 = vpop.permute.xlu0 %362
        %vm376 = vcmask 1046528
        %v377 = vrot.slane %v312, 1
        %v378 = vrot.slane %v282, 1
        %v379 = vsel %vm376, %v377, %v378
        %v380 = vrot.slane %v316, 1
        %v381 = vsel %vm376, %v378, %v380
        %v382 = vrot.slane %v313, 1
        %v383 = vrot.slane %v285, 1
        %v384 = vsel %vm376, %v382, %v383
        %v385 = vrot.slane %v317, 1
        %v386 = vsel %vm376, %v383, %v385
        %v387 = vrot.slane %v314, 1
        %v388 = vrot.slane %v288, 1
        %v389 = vsel %vm376, %v387, %v388
        %v390 = vrot.slane %v318, 1
        %v391 = vsel %vm376, %v388, %v390
        %v392 = vrot.slane %v315, 1
        %v393 = vrot.slane %v291, 1
        %v394 = vsel %vm376, %v392, %v393
        %v395 = vrot.slane %v319, 1
        %v396 = vsel %vm376, %v393, %v395
        %405 = vrot.lane.b32.xlu0 %v379, 127
        %v406 = vpop.permute.xlu0 %405
        %407 = vrot.lane.b32.xlu0 %v381, 127
        %v408 = vpop.permute.xlu0 %407
        %409 = vrot.lane.b32.xlu0 %v384, 127
        %v410 = vpop.permute.xlu0 %409
        %411 = vrot.lane.b32.xlu0 %v386, 127
        %v412 = vpop.permute.xlu0 %411
        %413 = vrot.lane.b32.xlu0 %v389, 127
        %v414 = vpop.permute.xlu0 %413
        %415 = vrot.lane.b32.xlu0 %v391, 127
        %v416 = vpop.permute.xlu0 %415
        %417 = vrot.lane.b32.xlu0 %v394, 127
        %v418 = vpop.permute.xlu0 %417
        %419 = vrot.lane.b32.xlu0 %v396, 127
        %v420 = vpop.permute.xlu0 %419
        %429 = vrot.lane.b32.xlu0 %v379, 126
        %v430 = vpop.permute.xlu0 %429
        %431 = vrot.lane.b32.xlu0 %v381, 126
        %v432 = vpop.permute.xlu0 %431
        %433 = vrot.lane.b32.xlu0 %v384, 126
        %v434 = vpop.permute.xlu0 %433
        %435 = vrot.lane.b32.xlu0 %v386, 126
        %v436 = vpop.permute.xlu0 %435
        %437 = vrot.lane.b32.xlu0 %v389, 126
        %v438 = vpop.permute.xlu0 %437
        %439 = vrot.lane.b32.xlu0 %v391, 126
        %v440 = vpop.permute.xlu0 %439
        %441 = vrot.lane.b32.xlu0 %v394, 126
        %v442 = vpop.permute.xlu0 %441
        %443 = vrot.lane.b32.xlu0 %v396, 126
        %v444 = vpop.permute.xlu0 %443
        %vm453 = vcmask 1045504
        %v454 = vrot.slane %v312, 2
        %v455 = vrot.slane %v282, 2
        %v456 = vsel %vm453, %v454, %v455
        %v457 = vrot.slane %v316, 2
        %v458 = vsel %vm453, %v455, %v457
        %v459 = vrot.slane %v313, 2
        %v460 = vrot.slane %v285, 2
        %v461 = vsel %vm453, %v459, %v460
        %v462 = vrot.slane %v317, 2
        %v463 = vsel %vm453, %v460, %v462
        %v464 = vrot.slane %v314, 2
        %v465 = vrot.slane %v288, 2
        %v466 = vsel %vm453, %v464, %v465
        %v467 = vrot.slane %v318, 2
        %v468 = vsel %vm453, %v465, %v467
        %v469 = vrot.slane %v315, 2
        %v470 = vrot.slane %v291, 2
        %v471 = vsel %vm453, %v469, %v470
        %v472 = vrot.slane %v319, 2
        %v473 = vsel %vm453, %v470, %v472
        %482 = vrot.lane.b32.xlu0 %v456, 127
        %v483 = vpop.permute.xlu0 %482
        %484 = vrot.lane.b32.xlu0 %v458, 127
        %v485 = vpop.permute.xlu0 %484
        %486 = vrot.lane.b32.xlu0 %v461, 127
        %v487 = vpop.permute.xlu0 %486
        %488 = vrot.lane.b32.xlu0 %v463, 127
        %v489 = vpop.permute.xlu0 %488
        %490 = vrot.lane.b32.xlu0 %v466, 127
        %v491 = vpop.permute.xlu0 %490
        %492 = vrot.lane.b32.xlu0 %v468, 127
        %v493 = vpop.permute.xlu0 %492
        %494 = vrot.lane.b32.xlu0 %v471, 127
        %v495 = vpop.permute.xlu0 %494
        %496 = vrot.lane.b32.xlu0 %v473, 127
        %v497 = vpop.permute.xlu0 %496
        %506 = vrot.lane.b32.xlu0 %v456, 126
        %v507 = vpop.permute.xlu0 %506
        %508 = vrot.lane.b32.xlu0 %v458, 126
        %v509 = vpop.permute.xlu0 %508
        %510 = vrot.lane.b32.xlu0 %v461, 126
        %v511 = vpop.permute.xlu0 %510
        %512 = vrot.lane.b32.xlu0 %v463, 126
        %v513 = vpop.permute.xlu0 %512
        %514 = vrot.lane.b32.xlu0 %v466, 126
        %v515 = vpop.permute.xlu0 %514
        %516 = vrot.lane.b32.xlu0 %v468, 126
        %v517 = vpop.permute.xlu0 %516
        %518 = vrot.lane.b32.xlu0 %v471, 126
        %v519 = vpop.permute.xlu0 %518
        %520 = vrot.lane.b32.xlu0 %v473, 126
        %v521 = vpop.permute.xlu0 %520
        %v530 = vcombine.low %v312, %v314
        %v531 = vcombine.high %v312, %v314
        %v533 = vunpack.c.l.s4 1983009808
        %v534 = vunpack.c.0.s8 %v533
        %v535 = vlaneseq
        %v536 = vshrl.u32 %v535, 7
        %v537 = vsub.s32 %v534, %v536
        %v538 = vrot.slane %v530, %v537
        %v540 = vunpack.c.l.s4 1983009808
        %v541 = vunpack.c.0.s8 %v540
        %v542 = vlaneseq
        %v543 = vshrl.u32 %v542, 7
        %v544 = vsub.s32 %v541, %v543
        %v545 = vrot.slane %v531, %v544
        %v546 = vcombine.low %v313, %v315
        %v547 = vcombine.high %v313, %v315
        %v549 = vunpack.c.l.s4 1983009808
        %v550 = vunpack.c.0.s8 %v549
        %v551 = vlaneseq
        %v552 = vshrl.u32 %v551, 7
        %v553 = vsub.s32 %v550, %v552
        %v554 = vrot.slane %v546, %v553
        %v556 = vunpack.c.l.s4 1983009808
        %v557 = vunpack.c.0.s8 %v556
        %v558 = vlaneseq
        %v559 = vshrl.u32 %v558, 7
        %v560 = vsub.s32 %v557, %v559
        %v561 = vrot.slane %v547, %v560
        %v562 = vcombine.low %v325, %v333
        %v563 = vcombine.high %v325, %v333
        %v565 = vunpack.c.l.s4 1983009808
        %v566 = vunpack.c.0.s8 %v565
        %v567 = vlaneseq
        %v568 = vshrl.u32 %v567, 7
        %v569 = vsub.s32 %v566, %v568
        %v570 = vrot.slane %v562, %v569
        %v572 = vunpack.c.l.s4 1983009808
        %v573 = vunpack.c.0.s8 %v572
        %v574 = vlaneseq
        %v575 = vshrl.u32 %v574, 7
        %v576 = vsub.s32 %v573, %v575
        %v577 = vrot.slane %v563, %v576
        %v578 = vcombine.low %v329, %v337
        %v579 = vcombine.high %v329, %v337
        %v581 = vunpack.c.l.s4 1983009808
        %v582 = vunpack.c.0.s8 %v581
        %v583 = vlaneseq
        %v584 = vshrl.u32 %v583, 7
        %v585 = vsub.s32 %v582, %v584
        %v586 = vrot.slane %v578, %v585
        %v588 = vunpack.c.l.s4 1983009808
        %v589 = vunpack.c.0.s8 %v588
        %v590 = vlaneseq
        %v591 = vshrl.u32 %v590, 7
        %v592 = vsub.s32 %v589, %v591
        %v593 = vrot.slane %v579, %v592
        %v594 = vcombine.low %v538, %v554
        %v595 = vcombine.high %v538, %v554
        %v597 = vunpack.c.l.s4 1934713408
        %v598 = vunpack.c.0.s8 %v597
        %v599 = vlaneseq
        %v600 = vshrl.u32 %v599, 7
        %v601 = vsub.s32 %v598, %v600
        %v602 = vrot.slane %v594, %v601
        %v604 = vunpack.c.l.s4 1934713408
        %v605 = vunpack.c.0.s8 %v604
        %v606 = vlaneseq
        %v607 = vshrl.u32 %v606, 7
        %v608 = vsub.s32 %v605, %v607
        %v609 = vrot.slane %v595, %v608
        %v610 = vcombine.low %v545, %v561
        %v611 = vcombine.high %v545, %v561
        %v613 = vunpack.c.l.s4 1934713408
        %v614 = vunpack.c.0.s8 %v613
        %v615 = vlaneseq
        %v616 = vshrl.u32 %v615, 7
        %v617 = vsub.s32 %v614, %v616
        %v618 = vrot.slane %v610, %v617
        %v620 = vunpack.c.l.s4 1934713408
        %v621 = vunpack.c.0.s8 %v620
        %v622 = vlaneseq
        %v623 = vshrl.u32 %v622, 7
        %v624 = vsub.s32 %v621, %v623
        %v625 = vrot.slane %v611, %v624
        %v626 = vcombine.low %v570, %v586
        %v627 = vcombine.high %v570, %v586
        %v629 = vunpack.c.l.s4 1934713408
        %v630 = vunpack.c.0.s8 %v629
        %v631 = vlaneseq
        %v632 = vshrl.u32 %v631, 7
        %v633 = vsub.s32 %v630, %v632
        %v634 = vrot.slane %v626, %v633
        %v636 = vunpack.c.l.s4 1934713408
        %v637 = vunpack.c.0.s8 %v636
        %v638 = vlaneseq
        %v639 = vshrl.u32 %v638, 7
        %v640 = vsub.s32 %v637, %v639
        %v641 = vrot.slane %v627, %v640
        %v642 = vcombine.low %v577, %v593
        %v643 = vcombine.high %v577, %v593
        %v645 = vunpack.c.l.s4 1934713408
        %v646 = vunpack.c.0.s8 %v645
        %v647 = vlaneseq
        %v648 = vshrl.u32 %v647, 7
        %v649 = vsub.s32 %v646, %v648
        %v650 = vrot.slane %v642, %v649
        %v652 = vunpack.c.l.s4 1934713408
        %v653 = vunpack.c.0.s8 %v652
        %v654 = vlaneseq
        %v655 = vshrl.u32 %v654, 7
        %v656 = vsub.s32 %v653, %v655
        %v657 = vrot.slane %v643, %v656
        %v658 = vcombine.low %v602, %v634
        %v659 = vcombine.high %v602, %v634
        %v660 = vcombine.low %v609, %v641
        %v661 = vcombine.high %v609, %v641
        %v662 = vcombine.low %v618, %v650
        %v663 = vcombine.high %v618, %v650
        %v664 = vcombine.low %v625, %v657
        %v665 = vcombine.high %v625, %v657
        %v666 = vcombine.low %v349, %v357
        %v667 = vcombine.high %v349, %v357
        %v669 = vunpack.c.l.s4 1983009808
        %v670 = vunpack.c.0.s8 %v669
        %v671 = vlaneseq
        %v672 = vshrl.u32 %v671, 7
        %v673 = vsub.s32 %v670, %v672
        %v674 = vrot.slane %v666, %v673
        %v676 = vunpack.c.l.s4 1983009808
        %v677 = vunpack.c.0.s8 %v676
        %v678 = vlaneseq
        %v679 = vshrl.u32 %v678, 7
        %v680 = vsub.s32 %v677, %v679
        %v681 = vrot.slane %v667, %v680
        %v682 = vcombine.low %v353, %v361
        %v683 = vcombine.high %v353, %v361
        %v685 = vunpack.c.l.s4 1983009808
        %v686 = vunpack.c.0.s8 %v685
        %v687 = vlaneseq
        %v688 = vshrl.u32 %v687, 7
        %v689 = vsub.s32 %v686, %v688
        %v690 = vrot.slane %v682, %v689
        %v692 = vunpack.c.l.s4 1983009808
        %v693 = vunpack.c.0.s8 %v692
        %v694 = vlaneseq
        %v695 = vshrl.u32 %v694, 7
        %v696 = vsub.s32 %v693, %v695
        %v697 = vrot.slane %v683, %v696
        %v698 = vcombine.low %v379, %v389
        %v699 = vcombine.high %v379, %v389
        %v701 = vunpack.c.l.s4 1983009808
        %v702 = vunpack.c.0.s8 %v701
        %v703 = vlaneseq
        %v704 = vshrl.u32 %v703, 7
        %v705 = vsub.s32 %v702, %v704
        %v706 = vrot.slane %v698, %v705
        %v708 = vunpack.c.l.s4 1983009808
        %v709 = vunpack.c.0.s8 %v708
        %v710 = vlaneseq
        %v711 = vshrl.u32 %v710, 7
        %v712 = vsub.s32 %v709, %v711
        %v713 = vrot.slane %v699, %v712
        %v714 = vcombine.low %v384, %v394
        %v715 = vcombine.high %v384, %v394
        %v717 = vunpack.c.l.s4 1983009808
        %v718 = vunpack.c.0.s8 %v717
        %v719 = vlaneseq
        %v720 = vshrl.u32 %v719, 7
        %v721 = vsub.s32 %v718, %v720
        %v722 = vrot.slane %v714, %v721
        %v724 = vunpack.c.l.s4 1983009808
        %v725 = vunpack.c.0.s8 %v724
        %v726 = vlaneseq
        %v727 = vshrl.u32 %v726, 7
        %v728 = vsub.s32 %v725, %v727
        %v729 = vrot.slane %v715, %v728
        %v730 = vcombine.low %v674, %v690
        %v731 = vcombine.high %v674, %v690
        %v733 = vunpack.c.l.s4 1934713408
        %v734 = vunpack.c.0.s8 %v733
        %v735 = vlaneseq
        %v736 = vshrl.u32 %v735, 7
        %v737 = vsub.s32 %v734, %v736
        %v738 = vrot.slane %v730, %v737
        %v740 = vunpack.c.l.s4 1934713408
        %v741 = vunpack.c.0.s8 %v740
        %v742 = vlaneseq
        %v743 = vshrl.u32 %v742, 7
        %v744 = vsub.s32 %v741, %v743
        %v745 = vrot.slane %v731, %v744
        %v746 = vcombine.low %v681, %v697
        %v747 = vcombine.high %v681, %v697
        %v749 = vunpack.c.l.s4 1934713408
        %v750 = vunpack.c.0.s8 %v749
        %v751 = vlaneseq
        %v752 = vshrl.u32 %v751, 7
        %v753 = vsub.s32 %v750, %v752
        %v754 = vrot.slane %v746, %v753
        %v756 = vunpack.c.l.s4 1934713408
        %v757 = vunpack.c.0.s8 %v756
        %v758 = vlaneseq
        %v759 = vshrl.u32 %v758, 7
        %v760 = vsub.s32 %v757, %v759
        %v761 = vrot.slane %v747, %v760
        %v762 = vcombine.low %v706, %v722
        %v763 = vcombine.high %v706, %v722
        %v765 = vunpack.c.l.s4 1934713408
        %v766 = vunpack.c.0.s8 %v765
        %v767 = vlaneseq
        %v768 = vshrl.u32 %v767, 7
        %v769 = vsub.s32 %v766, %v768
        %v770 = vrot.slane %v762, %v769
        %v772 = vunpack.c.l.s4 1934713408
        %v773 = vunpack.c.0.s8 %v772
        %v774 = vlaneseq
        %v775 = vshrl.u32 %v774, 7
        %v776 = vsub.s32 %v773, %v775
        %v777 = vrot.slane %v763, %v776
        %v778 = vcombine.low %v713, %v729
        %v779 = vcombine.high %v713, %v729
        %v781 = vunpack.c.l.s4 1934713408
        %v782 = vunpack.c.0.s8 %v781
        %v783 = vlaneseq
        %v784 = vshrl.u32 %v783, 7
        %v785 = vsub.s32 %v782, %v784
        %v786 = vrot.slane %v778, %v785
        %v788 = vunpack.c.l.s4 1934713408
        %v789 = vunpack.c.0.s8 %v788
        %v790 = vlaneseq
        %v791 = vshrl.u32 %v790, 7
        %v792 = vsub.s32 %v789, %v791
        %v793 = vrot.slane %v779, %v792
        %v794 = vcombine.low %v738, %v770
        %v795 = vcombine.high %v738, %v770
        %v796 = vcombine.low %v745, %v777
        %v797 = vcombine.high %v745, %v777
        %v798 = vcombine.low %v754, %v786
        %v799 = vcombine.high %v754, %v786
        %v800 = vcombine.low %v761, %v793
        %v801 = vcombine.high %v761, %v793
        %v802 = vcombine.low %v406, %v414
        %v803 = vcombine.high %v406, %v414
        %v805 = vunpack.c.l.s4 1983009808
        %v806 = vunpack.c.0.s8 %v805
        %v807 = vlaneseq
        %v808 = vshrl.u32 %v807, 7
        %v809 = vsub.s32 %v806, %v808
        %v810 = vrot.slane %v802, %v809
        %v812 = vunpack.c.l.s4 1983009808
        %v813 = vunpack.c.0.s8 %v812
        %v814 = vlaneseq
        %v815 = vshrl.u32 %v814, 7
        %v816 = vsub.s32 %v813, %v815
        %v817 = vrot.slane %v803, %v816
        %v818 = vcombine.low %v410, %v418
        %v819 = vcombine.high %v410, %v418
        %v821 = vunpack.c.l.s4 1983009808
        %v822 = vunpack.c.0.s8 %v821
        %v823 = vlaneseq
        %v824 = vshrl.u32 %v823, 7
        %v825 = vsub.s32 %v822, %v824
        %v826 = vrot.slane %v818, %v825
        %v828 = vunpack.c.l.s4 1983009808
        %v829 = vunpack.c.0.s8 %v828
        %v830 = vlaneseq
        %v831 = vshrl.u32 %v830, 7
        %v832 = vsub.s32 %v829, %v831
        %v833 = vrot.slane %v819, %v832
        %v834 = vcombine.low %v430, %v438
        %v835 = vcombine.high %v430, %v438
        %v837 = vunpack.c.l.s4 1983009808
        %v838 = vunpack.c.0.s8 %v837
        %v839 = vlaneseq
        %v840 = vshrl.u32 %v839, 7
        %v841 = vsub.s32 %v838, %v840
        %v842 = vrot.slane %v834, %v841
        %v844 = vunpack.c.l.s4 1983009808
        %v845 = vunpack.c.0.s8 %v844
        %v846 = vlaneseq
        %v847 = vshrl.u32 %v846, 7
        %v848 = vsub.s32 %v845, %v847
        %v849 = vrot.slane %v835, %v848
        %v850 = vcombine.low %v434, %v442
        %v851 = vcombine.high %v434, %v442
        %v853 = vunpack.c.l.s4 1983009808
        %v854 = vunpack.c.0.s8 %v853
        %v855 = vlaneseq
        %v856 = vshrl.u32 %v855, 7
        %v857 = vsub.s32 %v854, %v856
        %v858 = vrot.slane %v850, %v857
        %v860 = vunpack.c.l.s4 1983009808
        %v861 = vunpack.c.0.s8 %v860
        %v862 = vlaneseq
        %v863 = vshrl.u32 %v862, 7
        %v864 = vsub.s32 %v861, %v863
        %v865 = vrot.slane %v851, %v864
        %v866 = vcombine.low %v810, %v826
        %v867 = vcombine.high %v810, %v826
        %v869 = vunpack.c.l.s4 1934713408
        %v870 = vunpack.c.0.s8 %v869
        %v871 = vlaneseq
        %v872 = vshrl.u32 %v871, 7
        %v873 = vsub.s32 %v870, %v872
        %v874 = vrot.slane %v866, %v873
        %v876 = vunpack.c.l.s4 1934713408
        %v877 = vunpack.c.0.s8 %v876
        %v878 = vlaneseq
        %v879 = vshrl.u32 %v878, 7
        %v880 = vsub.s32 %v877, %v879
        %v881 = vrot.slane %v867, %v880
        %v882 = vcombine.low %v817, %v833
        %v883 = vcombine.high %v817, %v833
        %v885 = vunpack.c.l.s4 1934713408
        %v886 = vunpack.c.0.s8 %v885
        %v887 = vlaneseq
        %v888 = vshrl.u32 %v887, 7
        %v889 = vsub.s32 %v886, %v888
        %v890 = vrot.slane %v882, %v889
        %v892 = vunpack.c.l.s4 1934713408
        %v893 = vunpack.c.0.s8 %v892
        %v894 = vlaneseq
        %v895 = vshrl.u32 %v894, 7
        %v896 = vsub.s32 %v893, %v895
        %v897 = vrot.slane %v883, %v896
        %v898 = vcombine.low %v842, %v858
        %v899 = vcombine.high %v842, %v858
        %v901 = vunpack.c.l.s4 1934713408
        %v902 = vunpack.c.0.s8 %v901
        %v903 = vlaneseq
        %v904 = vshrl.u32 %v903, 7
        %v905 = vsub.s32 %v902, %v904
        %v906 = vrot.slane %v898, %v905
        %v908 = vunpack.c.l.s4 1934713408
        %v909 = vunpack.c.0.s8 %v908
        %v910 = vlaneseq
        %v911 = vshrl.u32 %v910, 7
        %v912 = vsub.s32 %v909, %v911
        %v913 = vrot.slane %v899, %v912
        %v914 = vcombine.low %v849, %v865
        %v915 = vcombine.high %v849, %v865
        %v917 = vunpack.c.l.s4 1934713408
        %v918 = vunpack.c.0.s8 %v917
        %v919 = vlaneseq
        %v920 = vshrl.u32 %v919, 7
        %v921 = vsub.s32 %v918, %v920
        %v922 = vrot.slane %v914, %v921
        %v924 = vunpack.c.l.s4 1934713408
        %v925 = vunpack.c.0.s8 %v924
        %v926 = vlaneseq
        %v927 = vshrl.u32 %v926, 7
        %v928 = vsub.s32 %v925, %v927
        %v929 = vrot.slane %v915, %v928
        %v930 = vcombine.low %v874, %v906
        %v931 = vcombine.high %v874, %v906
        %v932 = vcombine.low %v881, %v913
        %v933 = vcombine.high %v881, %v913
        %v934 = vcombine.low %v890, %v922
        %v935 = vcombine.high %v890, %v922
        %v936 = vcombine.low %v897, %v929
        %v937 = vcombine.high %v897, %v929
        %v938 = vcombine.low %v456, %v466
        %v939 = vcombine.high %v456, %v466
        %v941 = vunpack.c.l.s4 1983009808
        %v942 = vunpack.c.0.s8 %v941
        %v943 = vlaneseq
        %v944 = vshrl.u32 %v943, 7
        %v945 = vsub.s32 %v942, %v944
        %v946 = vrot.slane %v938, %v945
        %v948 = vunpack.c.l.s4 1983009808
        %v949 = vunpack.c.0.s8 %v948
        %v950 = vlaneseq
        %v951 = vshrl.u32 %v950, 7
        %v952 = vsub.s32 %v949, %v951
        %v953 = vrot.slane %v939, %v952
        %v954 = vcombine.low %v461, %v471
        %v955 = vcombine.high %v461, %v471
        %v957 = vunpack.c.l.s4 1983009808
        %v958 = vunpack.c.0.s8 %v957
        %v959 = vlaneseq
        %v960 = vshrl.u32 %v959, 7
        %v961 = vsub.s32 %v958, %v960
        %v962 = vrot.slane %v954, %v961
        %v964 = vunpack.c.l.s4 1983009808
        %v965 = vunpack.c.0.s8 %v964
        %v966 = vlaneseq
        %v967 = vshrl.u32 %v966, 7
        %v968 = vsub.s32 %v965, %v967
        %v969 = vrot.slane %v955, %v968
        %v970 = vcombine.low %v483, %v491
        %v971 = vcombine.high %v483, %v491
        %v973 = vunpack.c.l.s4 1983009808
        %v974 = vunpack.c.0.s8 %v973
        %v975 = vlaneseq
        %v976 = vshrl.u32 %v975, 7
        %v977 = vsub.s32 %v974, %v976
        %v978 = vrot.slane %v970, %v977
        %v980 = vunpack.c.l.s4 1983009808
        %v981 = vunpack.c.0.s8 %v980
        %v982 = vlaneseq
        %v983 = vshrl.u32 %v982, 7
        %v984 = vsub.s32 %v981, %v983
        %v985 = vrot.slane %v971, %v984
        %v986 = vcombine.low %v487, %v495
        %v987 = vcombine.high %v487, %v495
        %v989 = vunpack.c.l.s4 1983009808
        %v990 = vunpack.c.0.s8 %v989
        %v991 = vlaneseq
        %v992 = vshrl.u32 %v991, 7
        %v993 = vsub.s32 %v990, %v992
        %v994 = vrot.slane %v986, %v993
        %v996 = vunpack.c.l.s4 1983009808
        %v997 = vunpack.c.0.s8 %v996
        %v998 = vlaneseq
        %v999 = vshrl.u32 %v998, 7
        %v1000 = vsub.s32 %v997, %v999
        %v1001 = vrot.slane %v987, %v1000
        %v1002 = vcombine.low %v946, %v962
        %v1003 = vcombine.high %v946, %v962
        %v1005 = vunpack.c.l.s4 1934713408
        %v1006 = vunpack.c.0.s8 %v1005
        %v1007 = vlaneseq
        %v1008 = vshrl.u32 %v1007, 7
        %v1009 = vsub.s32 %v1006, %v1008
        %v1010 = vrot.slane %v1002, %v1009
        %v1012 = vunpack.c.l.s4 1934713408
        %v1013 = vunpack.c.0.s8 %v1012
        %v1014 = vlaneseq
        %v1015 = vshrl.u32 %v1014, 7
        %v1016 = vsub.s32 %v1013, %v1015
        %v1017 = vrot.slane %v1003, %v1016
        %v1018 = vcombine.low %v953, %v969
        %v1019 = vcombine.high %v953, %v969
        %v1021 = vunpack.c.l.s4 1934713408
        %v1022 = vunpack.c.0.s8 %v1021
        %v1023 = vlaneseq
        %v1024 = vshrl.u32 %v1023, 7
        %v1025 = vsub.s32 %v1022, %v1024
        %v1026 = vrot.slane %v1018, %v1025
        %v1028 = vunpack.c.l.s4 1934713408
        %v1029 = vunpack.c.0.s8 %v1028
        %v1030 = vlaneseq
        %v1031 = vshrl.u32 %v1030, 7
        %v1032 = vsub.s32 %v1029, %v1031
        %v1033 = vrot.slane %v1019, %v1032
        %v1034 = vcombine.low %v978, %v994
        %v1035 = vcombine.high %v978, %v994
        %v1037 = vunpack.c.l.s4 1934713408
        %v1038 = vunpack.c.0.s8 %v1037
        %v1039 = vlaneseq
        %v1040 = vshrl.u32 %v1039, 7
        %v1041 = vsub.s32 %v1038, %v1040
        %v1042 = vrot.slane %v1034, %v1041
        %v1044 = vunpack.c.l.s4 1934713408
        %v1045 = vunpack.c.0.s8 %v1044
        %v1046 = vlaneseq
        %v1047 = vshrl.u32 %v1046, 7
        %v1048 = vsub.s32 %v1045, %v1047
        %v1049 = vrot.slane %v1035, %v1048
        %v1050 = vcombine.low %v985, %v1001
        %v1051 = vcombine.high %v985, %v1001
        %v1053 = vunpack.c.l.s4 1934713408
        %v1054 = vunpack.c.0.s8 %v1053
        %v1055 = vlaneseq
        %v1056 = vshrl.u32 %v1055, 7
        %v1057 = vsub.s32 %v1054, %v1056
        %v1058 = vrot.slane %v1050, %v1057
        %v1060 = vunpack.c.l.s4 1934713408
        %v1061 = vunpack.c.0.s8 %v1060
        %v1062 = vlaneseq
        %v1063 = vshrl.u32 %v1062, 7
        %v1064 = vsub.s32 %v1061, %v1063
        %v1065 = vrot.slane %v1051, %v1064
        %v1066 = vcombine.low %v1010, %v1042
        %v1067 = vcombine.high %v1010, %v1042
        %v1068 = vcombine.low %v1017, %v1049
        %v1069 = vcombine.high %v1017, %v1049
        %v1070 = vcombine.low %v1026, %v1058
        %v1071 = vcombine.high %v1026, %v1058
        %v1072 = vcombine.low %v1033, %v1065
        %v1073 = vcombine.high %v1033, %v1065
        %v1074 = vcombine.low %v507, %v515
        %v1075 = vcombine.high %v507, %v515
        %v1077 = vunpack.c.l.s4 1983009808
        %v1078 = vunpack.c.0.s8 %v1077
        %v1079 = vlaneseq
        %v1080 = vshrl.u32 %v1079, 7
        %v1081 = vsub.s32 %v1078, %v1080
        %v1082 = vrot.slane %v1074, %v1081
        %v1084 = vunpack.c.l.s4 1983009808
        %v1085 = vunpack.c.0.s8 %v1084
        %v1086 = vlaneseq
        %v1087 = vshrl.u32 %v1086, 7
        %v1088 = vsub.s32 %v1085, %v1087
        %v1089 = vrot.slane %v1075, %v1088
        %v1090 = vcombine.low %v511, %v519
        %v1091 = vcombine.high %v511, %v519
        %v1093 = vunpack.c.l.s4 1983009808
        %v1094 = vunpack.c.0.s8 %v1093
        %v1095 = vlaneseq
        %v1096 = vshrl.u32 %v1095, 7
        %v1097 = vsub.s32 %v1094, %v1096
        %v1098 = vrot.slane %v1090, %v1097
        %v1100 = vunpack.c.l.s4 1983009808
        %v1101 = vunpack.c.0.s8 %v1100
        %v1102 = vlaneseq
        %v1103 = vshrl.u32 %v1102, 7
        %v1104 = vsub.s32 %v1101, %v1103
        %v1105 = vrot.slane %v1091, %v1104
        %v1106 = vcombine.low %v1082, %v1098
        %v1107 = vcombine.high %v1082, %v1098
        %v1109 = vunpack.c.l.s4 1934713408
        %v1110 = vunpack.c.0.s8 %v1109
        %v1111 = vlaneseq
        %v1112 = vshrl.u32 %v1111, 7
        %v1113 = vsub.s32 %v1110, %v1112
        %v1114 = vrot.slane %v1106, %v1113
        %v1116 = vunpack.c.l.s4 1934713408
        %v1117 = vunpack.c.0.s8 %v1116
        %v1118 = vlaneseq
        %v1119 = vshrl.u32 %v1118, 7
        %v1120 = vsub.s32 %v1117, %v1119
        %v1121 = vrot.slane %v1107, %v1120
        %v1122 = vcombine.low %v1089, %v1105
        %v1123 = vcombine.high %v1089, %v1105
        %v1125 = vunpack.c.l.s4 1934713408
        %v1126 = vunpack.c.0.s8 %v1125
        %v1127 = vlaneseq
        %v1128 = vshrl.u32 %v1127, 7
        %v1129 = vsub.s32 %v1126, %v1128
        %v1130 = vrot.slane %v1122, %v1129
        %v1132 = vunpack.c.l.s4 1934713408
        %v1133 = vunpack.c.0.s8 %v1132
        %v1134 = vlaneseq
        %v1135 = vshrl.u32 %v1134, 7
        %v1136 = vsub.s32 %v1133, %v1135
        %v1137 = vrot.slane %v1123, %v1136
        %v1138 = vcombine.high %v1114, 0.0
        %v1139 = vcombine.high %v1121, 0.0
        %v1140 = vcombine.high %v1130, 0.0
        %v1141 = vcombine.high %v1137, 0.0
        %v1142 = vcombine.low %v282, %v288
        %v1143 = vcombine.high %v282, %v288
        %v1145 = vunpack.c.l.s4 1983009808
        %v1146 = vunpack.c.0.s8 %v1145
        %v1147 = vlaneseq
        %v1148 = vshrl.u32 %v1147, 7
        %v1149 = vsub.s32 %v1146, %v1148
        %v1150 = vrot.slane %v1142, %v1149
        %v1152 = vunpack.c.l.s4 1983009808
        %v1153 = vunpack.c.0.s8 %v1152
        %v1154 = vlaneseq
        %v1155 = vshrl.u32 %v1154, 7
        %v1156 = vsub.s32 %v1153, %v1155
        %v1157 = vrot.slane %v1143, %v1156
        %v1158 = vcombine.low %v285, %v291
        %v1159 = vcombine.high %v285, %v291
        %v1161 = vunpack.c.l.s4 1983009808
        %v1162 = vunpack.c.0.s8 %v1161
        %v1163 = vlaneseq
        %v1164 = vshrl.u32 %v1163, 7
        %v1165 = vsub.s32 %v1162, %v1164
        %v1166 = vrot.slane %v1158, %v1165
        %v1168 = vunpack.c.l.s4 1983009808
        %v1169 = vunpack.c.0.s8 %v1168
        %v1170 = vlaneseq
        %v1171 = vshrl.u32 %v1170, 7
        %v1172 = vsub.s32 %v1169, %v1171
        %v1173 = vrot.slane %v1159, %v1172
        %v1174 = vcombine.low %v327, %v335
        %v1175 = vcombine.high %v327, %v335
        %v1177 = vunpack.c.l.s4 1983009808
        %v1178 = vunpack.c.0.s8 %v1177
        %v1179 = vlaneseq
        %v1180 = vshrl.u32 %v1179, 7
        %v1181 = vsub.s32 %v1178, %v1180
        %v1182 = vrot.slane %v1174, %v1181
        %v1184 = vunpack.c.l.s4 1983009808
        %v1185 = vunpack.c.0.s8 %v1184
        %v1186 = vlaneseq
        %v1187 = vshrl.u32 %v1186, 7
        %v1188 = vsub.s32 %v1185, %v1187
        %v1189 = vrot.slane %v1175, %v1188
        %v1190 = vcombine.low %v331, %v339
        %v1191 = vcombine.high %v331, %v339
        %v1193 = vunpack.c.l.s4 1983009808
        %v1194 = vunpack.c.0.s8 %v1193
        %v1195 = vlaneseq
        %v1196 = vshrl.u32 %v1195, 7
        %v1197 = vsub.s32 %v1194, %v1196
        %v1198 = vrot.slane %v1190, %v1197
        %v1200 = vunpack.c.l.s4 1983009808
        %v1201 = vunpack.c.0.s8 %v1200
        %v1202 = vlaneseq
        %v1203 = vshrl.u32 %v1202, 7
        %v1204 = vsub.s32 %v1201, %v1203
        %v1205 = vrot.slane %v1191, %v1204
        %v1206 = vcombine.low %v1150, %v1166
        %v1207 = vcombine.high %v1150, %v1166
        %v1209 = vunpack.c.l.s4 1934713408
        %v1210 = vunpack.c.0.s8 %v1209
        %v1211 = vlaneseq
        %v1212 = vshrl.u32 %v1211, 7
        %v1213 = vsub.s32 %v1210, %v1212
        %v1214 = vrot.slane %v1206, %v1213
        %v1216 = vunpack.c.l.s4 1934713408
        %v1217 = vunpack.c.0.s8 %v1216
        %v1218 = vlaneseq
        %v1219 = vshrl.u32 %v1218, 7
        %v1220 = vsub.s32 %v1217, %v1219
        %v1221 = vrot.slane %v1207, %v1220
        %v1222 = vcombine.low %v1157, %v1173
        %v1223 = vcombine.high %v1157, %v1173
        %v1225 = vunpack.c.l.s4 1934713408
        %v1226 = vunpack.c.0.s8 %v1225
        %v1227 = vlaneseq
        %v1228 = vshrl.u32 %v1227, 7
        %v1229 = vsub.s32 %v1226, %v1228
        %v1230 = vrot.slane %v1222, %v1229
        %v1232 = vunpack.c.l.s4 1934713408
        %v1233 = vunpack.c.0.s8 %v1232
        %v1234 = vlaneseq
        %v1235 = vshrl.u32 %v1234, 7
        %v1236 = vsub.s32 %v1233, %v1235
        %v1237 = vrot.slane %v1223, %v1236
        %v1238 = vcombine.low %v1182, %v1198
        %v1239 = vcombine.high %v1182, %v1198
        %v1241 = vunpack.c.l.s4 1934713408
        %v1242 = vunpack.c.0.s8 %v1241
        %v1243 = vlaneseq
        %v1244 = vshrl.u32 %v1243, 7
        %v1245 = vsub.s32 %v1242, %v1244
        %v1246 = vrot.slane %v1238, %v1245
        %v1248 = vunpack.c.l.s4 1934713408
        %v1249 = vunpack.c.0.s8 %v1248
        %v1250 = vlaneseq
        %v1251 = vshrl.u32 %v1250, 7
        %v1252 = vsub.s32 %v1249, %v1251
        %v1253 = vrot.slane %v1239, %v1252
        %v1254 = vcombine.low %v1189, %v1205
        %v1255 = vcombine.high %v1189, %v1205
        %v1257 = vunpack.c.l.s4 1934713408
        %v1258 = vunpack.c.0.s8 %v1257
        %v1259 = vlaneseq
        %v1260 = vshrl.u32 %v1259, 7
        %v1261 = vsub.s32 %v1258, %v1260
        %v1262 = vrot.slane %v1254, %v1261
        %v1264 = vunpack.c.l.s4 1934713408
        %v1265 = vunpack.c.0.s8 %v1264
        %v1266 = vlaneseq
        %v1267 = vshrl.u32 %v1266, 7
        %v1268 = vsub.s32 %v1265, %v1267
        %v1269 = vrot.slane %v1255, %v1268
        %v1270 = vcombine.low %v1214, %v1246
        %v1271 = vcombine.high %v1214, %v1246
        %v1272 = vcombine.low %v1221, %v1253
        %v1273 = vcombine.high %v1221, %v1253
        %v1274 = vcombine.low %v1230, %v1262
        %v1275 = vcombine.high %v1230, %v1262
        %v1276 = vcombine.low %v1237, %v1269
        %v1277 = vcombine.high %v1237, %v1269
        %v1278 = vcombine.low %v351, %v359
        %v1279 = vcombine.high %v351, %v359
        %v1281 = vunpack.c.l.s4 1983009808
        %v1282 = vunpack.c.0.s8 %v1281
        %v1283 = vlaneseq
        %v1284 = vshrl.u32 %v1283, 7
        %v1285 = vsub.s32 %v1282, %v1284
        %v1286 = vrot.slane %v1278, %v1285
        %v1288 = vunpack.c.l.s4 1983009808
        %v1289 = vunpack.c.0.s8 %v1288
        %v1290 = vlaneseq
        %v1291 = vshrl.u32 %v1290, 7
        %v1292 = vsub.s32 %v1289, %v1291
        %v1293 = vrot.slane %v1279, %v1292
        %v1294 = vcombine.low %v355, %v363
        %v1295 = vcombine.high %v355, %v363
        %v1297 = vunpack.c.l.s4 1983009808
        %v1298 = vunpack.c.0.s8 %v1297
        %v1299 = vlaneseq
        %v1300 = vshrl.u32 %v1299, 7
        %v1301 = vsub.s32 %v1298, %v1300
        %v1302 = vrot.slane %v1294, %v1301
        %v1304 = vunpack.c.l.s4 1983009808
        %v1305 = vunpack.c.0.s8 %v1304
        %v1306 = vlaneseq
        %v1307 = vshrl.u32 %v1306, 7
        %v1308 = vsub.s32 %v1305, %v1307
        %v1309 = vrot.slane %v1295, %v1308
        %v1310 = vcombine.low %v381, %v391
        %v1311 = vcombine.high %v381, %v391
        %v1313 = vunpack.c.l.s4 1983009808
        %v1314 = vunpack.c.0.s8 %v1313
        %v1315 = vlaneseq
        %v1316 = vshrl.u32 %v1315, 7
        %v1317 = vsub.s32 %v1314, %v1316
        %v1318 = vrot.slane %v1310, %v1317
        %v1320 = vunpack.c.l.s4 1983009808
        %v1321 = vunpack.c.0.s8 %v1320
        %v1322 = vlaneseq
        %v1323 = vshrl.u32 %v1322, 7
        %v1324 = vsub.s32 %v1321, %v1323
        %v1325 = vrot.slane %v1311, %v1324
        %v1326 = vcombine.low %v386, %v396
        %v1327 = vcombine.high %v386, %v396
        %v1329 = vunpack.c.l.s4 1983009808
        %v1330 = vunpack.c.0.s8 %v1329
        %v1331 = vlaneseq
        %v1332 = vshrl.u32 %v1331, 7
        %v1333 = vsub.s32 %v1330, %v1332
        %v1334 = vrot.slane %v1326, %v1333
        %v1336 = vunpack.c.l.s4 1983009808
        %v1337 = vunpack.c.0.s8 %v1336
        %v1338 = vlaneseq
        %v1339 = vshrl.u32 %v1338, 7
        %v1340 = vsub.s32 %v1337, %v1339
        %v1341 = vrot.slane %v1327, %v1340
        %v1342 = vcombine.low %v1286, %v1302
        %v1343 = vcombine.high %v1286, %v1302
        %v1345 = vunpack.c.l.s4 1934713408
        %v1346 = vunpack.c.0.s8 %v1345
        %v1347 = vlaneseq
        %v1348 = vshrl.u32 %v1347, 7
        %v1349 = vsub.s32 %v1346, %v1348
        %v1350 = vrot.slane %v1342, %v1349
        %v1352 = vunpack.c.l.s4 1934713408
        %v1353 = vunpack.c.0.s8 %v1352
        %v1354 = vlaneseq
        %v1355 = vshrl.u32 %v1354, 7
        %v1356 = vsub.s32 %v1353, %v1355
        %v1357 = vrot.slane %v1343, %v1356
        %v1358 = vcombine.low %v1293, %v1309
        %v1359 = vcombine.high %v1293, %v1309
        %v1361 = vunpack.c.l.s4 1934713408
        %v1362 = vunpack.c.0.s8 %v1361
        %v1363 = vlaneseq
        %v1364 = vshrl.u32 %v1363, 7
        %v1365 = vsub.s32 %v1362, %v1364
        %v1366 = vrot.slane %v1358, %v1365
        %v1368 = vunpack.c.l.s4 1934713408
        %v1369 = vunpack.c.0.s8 %v1368
        %v1370 = vlaneseq
        %v1371 = vshrl.u32 %v1370, 7
        %v1372 = vsub.s32 %v1369, %v1371
        %v1373 = vrot.slane %v1359, %v1372
        %v1374 = vcombine.low %v1318, %v1334
        %v1375 = vcombine.high %v1318, %v1334
        %v1377 = vunpack.c.l.s4 1934713408
        %v1378 = vunpack.c.0.s8 %v1377
        %v1379 = vlaneseq
        %v1380 = vshrl.u32 %v1379, 7
        %v1381 = vsub.s32 %v1378, %v1380
        %v1382 = vrot.slane %v1374, %v1381
        %v1384 = vunpack.c.l.s4 1934713408
        %v1385 = vunpack.c.0.s8 %v1384
        %v1386 = vlaneseq
        %v1387 = vshrl.u32 %v1386, 7
        %v1388 = vsub.s32 %v1385, %v1387
        %v1389 = vrot.slane %v1375, %v1388
        %v1390 = vcombine.low %v1325, %v1341
        %v1391 = vcombine.high %v1325, %v1341
        %v1393 = vunpack.c.l.s4 1934713408
        %v1394 = vunpack.c.0.s8 %v1393
        %v1395 = vlaneseq
        %v1396 = vshrl.u32 %v1395, 7
        %v1397 = vsub.s32 %v1394, %v1396
        %v1398 = vrot.slane %v1390, %v1397
        %v1400 = vunpack.c.l.s4 1934713408
        %v1401 = vunpack.c.0.s8 %v1400
        %v1402 = vlaneseq
        %v1403 = vshrl.u32 %v1402, 7
        %v1404 = vsub.s32 %v1401, %v1403
        %v1405 = vrot.slane %v1391, %v1404
        %v1406 = vcombine.low %v1350, %v1382
        %v1407 = vcombine.high %v1350, %v1382
        %v1408 = vcombine.low %v1357, %v1389
        %v1409 = vcombine.high %v1357, %v1389
        %v1410 = vcombine.low %v1366, %v1398
        %v1411 = vcombine.high %v1366, %v1398
        %v1412 = vcombine.low %v1373, %v1405
        %v1413 = vcombine.high %v1373, %v1405
        %v1414 = vcombine.low %v408, %v416
        %v1415 = vcombine.high %v408, %v416
        %v1417 = vunpack.c.l.s4 1983009808
        %v1418 = vunpack.c.0.s8 %v1417
        %v1419 = vlaneseq
        %v1420 = vshrl.u32 %v1419, 7
        %v1421 = vsub.s32 %v1418, %v1420
        %v1422 = vrot.slane %v1414, %v1421
        %v1424 = vunpack.c.l.s4 1983009808
        %v1425 = vunpack.c.0.s8 %v1424
        %v1426 = vlaneseq
        %v1427 = vshrl.u32 %v1426, 7
        %v1428 = vsub.s32 %v1425, %v1427
        %v1429 = vrot.slane %v1415, %v1428
        %v1430 = vcombine.low %v412, %v420
        %v1431 = vcombine.high %v412, %v420
        %v1433 = vunpack.c.l.s4 1983009808
        %v1434 = vunpack.c.0.s8 %v1433
        %v1435 = vlaneseq
        %v1436 = vshrl.u32 %v1435, 7
        %v1437 = vsub.s32 %v1434, %v1436
        %v1438 = vrot.slane %v1430, %v1437
        %v1440 = vunpack.c.l.s4 1983009808
        %v1441 = vunpack.c.0.s8 %v1440
        %v1442 = vlaneseq
        %v1443 = vshrl.u32 %v1442, 7
        %v1444 = vsub.s32 %v1441, %v1443
        %v1445 = vrot.slane %v1431, %v1444
        %v1446 = vcombine.low %v432, %v440
        %v1447 = vcombine.high %v432, %v440
        %v1449 = vunpack.c.l.s4 1983009808
        %v1450 = vunpack.c.0.s8 %v1449
        %v1451 = vlaneseq
        %v1452 = vshrl.u32 %v1451, 7
        %v1453 = vsub.s32 %v1450, %v1452
        %v1454 = vrot.slane %v1446, %v1453
        %v1456 = vunpack.c.l.s4 1983009808
        %v1457 = vunpack.c.0.s8 %v1456
        %v1458 = vlaneseq
        %v1459 = vshrl.u32 %v1458, 7
        %v1460 = vsub.s32 %v1457, %v1459
        %v1461 = vrot.slane %v1447, %v1460
        %v1462 = vcombine.low %v436, %v444
        %v1463 = vcombine.high %v436, %v444
        %v1465 = vunpack.c.l.s4 1983009808
        %v1466 = vunpack.c.0.s8 %v1465
        %v1467 = vlaneseq
        %v1468 = vshrl.u32 %v1467, 7
        %v1469 = vsub.s32 %v1466, %v1468
        %v1470 = vrot.slane %v1462, %v1469
        %v1472 = vunpack.c.l.s4 1983009808
        %v1473 = vunpack.c.0.s8 %v1472
        %v1474 = vlaneseq
        %v1475 = vshrl.u32 %v1474, 7
        %v1476 = vsub.s32 %v1473, %v1475
        %v1477 = vrot.slane %v1463, %v1476
        %v1478 = vcombine.low %v1422, %v1438
        %v1479 = vcombine.high %v1422, %v1438
        %v1481 = vunpack.c.l.s4 1934713408
        %v1482 = vunpack.c.0.s8 %v1481
        %v1483 = vlaneseq
        %v1484 = vshrl.u32 %v1483, 7
        %v1485 = vsub.s32 %v1482, %v1484
        %v1486 = vrot.slane %v1478, %v1485
        %v1488 = vunpack.c.l.s4 1934713408
        %v1489 = vunpack.c.0.s8 %v1488
        %v1490 = vlaneseq
        %v1491 = vshrl.u32 %v1490, 7
        %v1492 = vsub.s32 %v1489, %v1491
        %v1493 = vrot.slane %v1479, %v1492
        %v1494 = vcombine.low %v1429, %v1445
        %v1495 = vcombine.high %v1429, %v1445
        %v1497 = vunpack.c.l.s4 1934713408
        %v1498 = vunpack.c.0.s8 %v1497
        %v1499 = vlaneseq
        %v1500 = vshrl.u32 %v1499, 7
        %v1501 = vsub.s32 %v1498, %v1500
        %v1502 = vrot.slane %v1494, %v1501
        %v1504 = vunpack.c.l.s4 1934713408
        %v1505 = vunpack.c.0.s8 %v1504
        %v1506 = vlaneseq
        %v1507 = vshrl.u32 %v1506, 7
        %v1508 = vsub.s32 %v1505, %v1507
        %v1509 = vrot.slane %v1495, %v1508
        %v1510 = vcombine.low %v1454, %v1470
        %v1511 = vcombine.high %v1454, %v1470
        %v1513 = vunpack.c.l.s4 1934713408
        %v1514 = vunpack.c.0.s8 %v1513
        %v1515 = vlaneseq
        %v1516 = vshrl.u32 %v1515, 7
        %v1517 = vsub.s32 %v1514, %v1516
        %v1518 = vrot.slane %v1510, %v1517
        %v1520 = vunpack.c.l.s4 1934713408
        %v1521 = vunpack.c.0.s8 %v1520
        %v1522 = vlaneseq
        %v1523 = vshrl.u32 %v1522, 7
        %v1524 = vsub.s32 %v1521, %v1523
        %v1525 = vrot.slane %v1511, %v1524
        %v1526 = vcombine.low %v1461, %v1477
        %v1527 = vcombine.high %v1461, %v1477
        %v1529 = vunpack.c.l.s4 1934713408
        %v1530 = vunpack.c.0.s8 %v1529
        %v1531 = vlaneseq
        %v1532 = vshrl.u32 %v1531, 7
        %v1533 = vsub.s32 %v1530, %v1532
        %v1534 = vrot.slane %v1526, %v1533
        %v1536 = vunpack.c.l.s4 1934713408
        %v1537 = vunpack.c.0.s8 %v1536
        %v1538 = vlaneseq
        %v1539 = vshrl.u32 %v1538, 7
        %v1540 = vsub.s32 %v1537, %v1539
        %v1541 = vrot.slane %v1527, %v1540
        %v1542 = vcombine.low %v1486, %v1518
        %v1543 = vcombine.high %v1486, %v1518
        %v1544 = vcombine.low %v1493, %v1525
        %v1545 = vcombine.high %v1493, %v1525
        %v1546 = vcombine.low %v1502, %v1534
        %v1547 = vcombine.high %v1502, %v1534
        %v1548 = vcombine.low %v1509, %v1541
        %v1549 = vcombine.high %v1509, %v1541
        %v1550 = vcombine.low %v458, %v468
        %v1551 = vcombine.high %v458, %v468
        %v1553 = vunpack.c.l.s4 1983009808
        %v1554 = vunpack.c.0.s8 %v1553
        %v1555 = vlaneseq
        %v1556 = vshrl.u32 %v1555, 7
        %v1557 = vsub.s32 %v1554, %v1556
        %v1558 = vrot.slane %v1550, %v1557
        %v1560 = vunpack.c.l.s4 1983009808
        %v1561 = vunpack.c.0.s8 %v1560
        %v1562 = vlaneseq
        %v1563 = vshrl.u32 %v1562, 7
        %v1564 = vsub.s32 %v1561, %v1563
        %v1565 = vrot.slane %v1551, %v1564
        %v1566 = vcombine.low %v463, %v473
        %v1567 = vcombine.high %v463, %v473
        %v1569 = vunpack.c.l.s4 1983009808
        %v1570 = vunpack.c.0.s8 %v1569
        %v1571 = vlaneseq
        %v1572 = vshrl.u32 %v1571, 7
        %v1573 = vsub.s32 %v1570, %v1572
        %v1574 = vrot.slane %v1566, %v1573
        %v1576 = vunpack.c.l.s4 1983009808
        %v1577 = vunpack.c.0.s8 %v1576
        %v1578 = vlaneseq
        %v1579 = vshrl.u32 %v1578, 7
        %v1580 = vsub.s32 %v1577, %v1579
        %v1581 = vrot.slane %v1567, %v1580
        %v1582 = vcombine.low %v485, %v493
        %v1583 = vcombine.high %v485, %v493
        %v1585 = vunpack.c.l.s4 1983009808
        %v1586 = vunpack.c.0.s8 %v1585
        %v1587 = vlaneseq
        %v1588 = vshrl.u32 %v1587, 7
        %v1589 = vsub.s32 %v1586, %v1588
        %v1590 = vrot.slane %v1582, %v1589
        %v1592 = vunpack.c.l.s4 1983009808
        %v1593 = vunpack.c.0.s8 %v1592
        %v1594 = vlaneseq
        %v1595 = vshrl.u32 %v1594, 7
        %v1596 = vsub.s32 %v1593, %v1595
        %v1597 = vrot.slane %v1583, %v1596
        %v1598 = vcombine.low %v489, %v497
        %v1599 = vcombine.high %v489, %v497
        %v1601 = vunpack.c.l.s4 1983009808
        %v1602 = vunpack.c.0.s8 %v1601
        %v1603 = vlaneseq
        %v1604 = vshrl.u32 %v1603, 7
        %v1605 = vsub.s32 %v1602, %v1604
        %v1606 = vrot.slane %v1598, %v1605
        %v1608 = vunpack.c.l.s4 1983009808
        %v1609 = vunpack.c.0.s8 %v1608
        %v1610 = vlaneseq
        %v1611 = vshrl.u32 %v1610, 7
        %v1612 = vsub.s32 %v1609, %v1611
        %v1613 = vrot.slane %v1599, %v1612
        %v1614 = vcombine.low %v1558, %v1574
        %v1615 = vcombine.high %v1558, %v1574
        %v1617 = vunpack.c.l.s4 1934713408
        %v1618 = vunpack.c.0.s8 %v1617
        %v1619 = vlaneseq
        %v1620 = vshrl.u32 %v1619, 7
        %v1621 = vsub.s32 %v1618, %v1620
        %v1622 = vrot.slane %v1614, %v1621
        %v1624 = vunpack.c.l.s4 1934713408
        %v1625 = vunpack.c.0.s8 %v1624
        %v1626 = vlaneseq
        %v1627 = vshrl.u32 %v1626, 7
        %v1628 = vsub.s32 %v1625, %v1627
        %v1629 = vrot.slane %v1615, %v1628
        %v1630 = vcombine.low %v1565, %v1581
        %v1631 = vcombine.high %v1565, %v1581
        %v1633 = vunpack.c.l.s4 1934713408
        %v1634 = vunpack.c.0.s8 %v1633
        %v1635 = vlaneseq
        %v1636 = vshrl.u32 %v1635, 7
        %v1637 = vsub.s32 %v1634, %v1636
        %v1638 = vrot.slane %v1630, %v1637
        %v1640 = vunpack.c.l.s4 1934713408
        %v1641 = vunpack.c.0.s8 %v1640
        %v1642 = vlaneseq
        %v1643 = vshrl.u32 %v1642, 7
        %v1644 = vsub.s32 %v1641, %v1643
        %v1645 = vrot.slane %v1631, %v1644
        %v1646 = vcombine.low %v1590, %v1606
        %v1647 = vcombine.high %v1590, %v1606
        %v1649 = vunpack.c.l.s4 1934713408
        %v1650 = vunpack.c.0.s8 %v1649
        %v1651 = vlaneseq
        %v1652 = vshrl.u32 %v1651, 7
        %v1653 = vsub.s32 %v1650, %v1652
        %v1654 = vrot.slane %v1646, %v1653
        %v1656 = vunpack.c.l.s4 1934713408
        %v1657 = vunpack.c.0.s8 %v1656
        %v1658 = vlaneseq
        %v1659 = vshrl.u32 %v1658, 7
        %v1660 = vsub.s32 %v1657, %v1659
        %v1661 = vrot.slane %v1647, %v1660
        %v1662 = vcombine.low %v1597, %v1613
        %v1663 = vcombine.high %v1597, %v1613
        %v1665 = vunpack.c.l.s4 1934713408
        %v1666 = vunpack.c.0.s8 %v1665
        %v1667 = vlaneseq
        %v1668 = vshrl.u32 %v1667, 7
        %v1669 = vsub.s32 %v1666, %v1668
        %v1670 = vrot.slane %v1662, %v1669
        %v1672 = vunpack.c.l.s4 1934713408
        %v1673 = vunpack.c.0.s8 %v1672
        %v1674 = vlaneseq
        %v1675 = vshrl.u32 %v1674, 7
        %v1676 = vsub.s32 %v1673, %v1675
        %v1677 = vrot.slane %v1663, %v1676
        %v1678 = vcombine.low %v1622, %v1654
        %v1679 = vcombine.high %v1622, %v1654
        %v1680 = vcombine.low %v1629, %v1661
        %v1681 = vcombine.high %v1629, %v1661
        %v1682 = vcombine.low %v1638, %v1670
        %v1683 = vcombine.high %v1638, %v1670
        %v1684 = vcombine.low %v1645, %v1677
        %v1685 = vcombine.high %v1645, %v1677
        %v1686 = vcombine.low %v509, %v517
        %v1687 = vcombine.high %v509, %v517
        %v1689 = vunpack.c.l.s4 1983009808
        %v1690 = vunpack.c.0.s8 %v1689
        %v1691 = vlaneseq
        %v1692 = vshrl.u32 %v1691, 7
        %v1693 = vsub.s32 %v1690, %v1692
        %v1694 = vrot.slane %v1686, %v1693
        %v1696 = vunpack.c.l.s4 1983009808
        %v1697 = vunpack.c.0.s8 %v1696
        %v1698 = vlaneseq
        %v1699 = vshrl.u32 %v1698, 7
        %v1700 = vsub.s32 %v1697, %v1699
        %v1701 = vrot.slane %v1687, %v1700
        %v1702 = vcombine.low %v513, %v521
        %v1703 = vcombine.high %v513, %v521
        %v1705 = vunpack.c.l.s4 1983009808
        %v1706 = vunpack.c.0.s8 %v1705
        %v1707 = vlaneseq
        %v1708 = vshrl.u32 %v1707, 7
        %v1709 = vsub.s32 %v1706, %v1708
        %v1710 = vrot.slane %v1702, %v1709
        %v1712 = vunpack.c.l.s4 1983009808
        %v1713 = vunpack.c.0.s8 %v1712
        %v1714 = vlaneseq
        %v1715 = vshrl.u32 %v1714, 7
        %v1716 = vsub.s32 %v1713, %v1715
        %v1717 = vrot.slane %v1703, %v1716
        %v1718 = vcombine.low %v1694, %v1710
        %v1719 = vcombine.high %v1694, %v1710
        %v1721 = vunpack.c.l.s4 1934713408
        %v1722 = vunpack.c.0.s8 %v1721
        %v1723 = vlaneseq
        %v1724 = vshrl.u32 %v1723, 7
        %v1725 = vsub.s32 %v1722, %v1724
        %v1726 = vrot.slane %v1718, %v1725
        %v1728 = vunpack.c.l.s4 1934713408
        %v1729 = vunpack.c.0.s8 %v1728
        %v1730 = vlaneseq
        %v1731 = vshrl.u32 %v1730, 7
        %v1732 = vsub.s32 %v1729, %v1731
        %v1733 = vrot.slane %v1719, %v1732
        %v1734 = vcombine.low %v1701, %v1717
        %v1735 = vcombine.high %v1701, %v1717
        %v1737 = vunpack.c.l.s4 1934713408
        %v1738 = vunpack.c.0.s8 %v1737
        %v1739 = vlaneseq
        %v1740 = vshrl.u32 %v1739, 7
        %v1741 = vsub.s32 %v1738, %v1740
        %v1742 = vrot.slane %v1734, %v1741
        %v1744 = vunpack.c.l.s4 1934713408
        %v1745 = vunpack.c.0.s8 %v1744
        %v1746 = vlaneseq
        %v1747 = vshrl.u32 %v1746, 7
        %v1748 = vsub.s32 %v1745, %v1747
        %v1749 = vrot.slane %v1735, %v1748
        %v1750 = vcombine.high %v1726, 0.0
        %v1751 = vcombine.high %v1733, 0.0
        %v1752 = vcombine.high %v1742, 0.0
        %v1753 = vcombine.high %v1749, 0.0
        %1759 = vrot.lane.b32.xlu0 %v659, 16
        %v1760 = vpop.permute.xlu0 %1759
        %1761 = vrot.lane.b32.xlu0 %v795, 16
        %v1762 = vpop.permute.xlu0 %1761
        %1763 = vrot.lane.b32.xlu0 %v931, 16
        %v1764 = vpop.permute.xlu0 %1763
        %1765 = vrot.lane.b32.xlu0 %v1067, 16
        %v1766 = vpop.permute.xlu0 %1765
        %1767 = vrot.lane.b32.xlu0 %v1138, 16
        %v1768 = vpop.permute.xlu0 %1767
        %1779 = vrot.lane.b32.xlu0 %v660, 32
        %v1780 = vpop.permute.xlu0 %1779
        %1781 = vrot.lane.b32.xlu0 %v796, 32
        %v1782 = vpop.permute.xlu0 %1781
        %1783 = vrot.lane.b32.xlu0 %v932, 32
        %v1784 = vpop.permute.xlu0 %1783
        %1785 = vrot.lane.b32.xlu0 %v1068, 32
        %v1786 = vpop.permute.xlu0 %1785
        %1787 = vrot.lane.b32.xlu0 %v1121, 32
        %v1788 = vpop.permute.xlu0 %1787
        %1799 = vrot.lane.b32.xlu0 %v661, 48
        %v1800 = vpop.permute.xlu0 %1799
        %1801 = vrot.lane.b32.xlu0 %v797, 48
        %v1802 = vpop.permute.xlu0 %1801
        %1803 = vrot.lane.b32.xlu0 %v933, 48
        %v1804 = vpop.permute.xlu0 %1803
        %1805 = vrot.lane.b32.xlu0 %v1069, 48
        %v1806 = vpop.permute.xlu0 %1805
        %1807 = vrot.lane.b32.xlu0 %v1139, 48
        %v1808 = vpop.permute.xlu0 %1807
        %1819 = vrot.lane.b32.xlu0 %v662, 64
        %v1820 = vpop.permute.xlu0 %1819
        %1821 = vrot.lane.b32.xlu0 %v798, 64
        %v1822 = vpop.permute.xlu0 %1821
        %1823 = vrot.lane.b32.xlu0 %v934, 64
        %v1824 = vpop.permute.xlu0 %1823
        %1825 = vrot.lane.b32.xlu0 %v1070, 64
        %v1826 = vpop.permute.xlu0 %1825
        %1827 = vrot.lane.b32.xlu0 %v1130, 64
        %v1828 = vpop.permute.xlu0 %1827
        %1839 = vrot.lane.b32.xlu0 %v663, 80
        %v1840 = vpop.permute.xlu0 %1839
        %1841 = vrot.lane.b32.xlu0 %v799, 80
        %v1842 = vpop.permute.xlu0 %1841
        %1843 = vrot.lane.b32.xlu0 %v935, 80
        %v1844 = vpop.permute.xlu0 %1843
        %1845 = vrot.lane.b32.xlu0 %v1071, 80
        %v1846 = vpop.permute.xlu0 %1845
        %1847 = vrot.lane.b32.xlu0 %v1140, 80
        %v1848 = vpop.permute.xlu0 %1847
        %1859 = vrot.lane.b32.xlu0 %v664, 96
        %v1860 = vpop.permute.xlu0 %1859
        %1861 = vrot.lane.b32.xlu0 %v800, 96
        %v1862 = vpop.permute.xlu0 %1861
        %1863 = vrot.lane.b32.xlu0 %v936, 96
        %v1864 = vpop.permute.xlu0 %1863
        %1865 = vrot.lane.b32.xlu0 %v1072, 96
        %v1866 = vpop.permute.xlu0 %1865
        %1867 = vrot.lane.b32.xlu0 %v1137, 96
        %v1868 = vpop.permute.xlu0 %1867
        %1879 = vrot.lane.b32.xlu0 %v665, 112
        %v1880 = vpop.permute.xlu0 %1879
        %1881 = vrot.lane.b32.xlu0 %v801, 112
        %v1882 = vpop.permute.xlu0 %1881
        %1883 = vrot.lane.b32.xlu0 %v937, 112
        %v1884 = vpop.permute.xlu0 %1883
        %1885 = vrot.lane.b32.xlu0 %v1073, 112
        %v1886 = vpop.permute.xlu0 %1885
        %1887 = vrot.lane.b32.xlu0 %v1141, 112
        %v1888 = vpop.permute.xlu0 %1887
        %1899 = vrot.lane.b32.xlu0 %v1271, 16
        %v1900 = vpop.permute.xlu0 %1899
        %1901 = vrot.lane.b32.xlu0 %v1407, 16
        %v1902 = vpop.permute.xlu0 %1901
        %1903 = vrot.lane.b32.xlu0 %v1543, 16
        %v1904 = vpop.permute.xlu0 %1903
        %1905 = vrot.lane.b32.xlu0 %v1679, 16
        %v1906 = vpop.permute.xlu0 %1905
        %1907 = vrot.lane.b32.xlu0 %v1750, 16
        %v1908 = vpop.permute.xlu0 %1907
        %1919 = vrot.lane.b32.xlu0 %v1272, 32
        %v1920 = vpop.permute.xlu0 %1919
        %1921 = vrot.lane.b32.xlu0 %v1408, 32
        %v1922 = vpop.permute.xlu0 %1921
        %1923 = vrot.lane.b32.xlu0 %v1544, 32
        %v1924 = vpop.permute.xlu0 %1923
        %1925 = vrot.lane.b32.xlu0 %v1680, 32
        %v1926 = vpop.permute.xlu0 %1925
        %1927 = vrot.lane.b32.xlu0 %v1733, 32
        %v1928 = vpop.permute.xlu0 %1927
        %1939 = vrot.lane.b32.xlu0 %v1273, 48
        %v1940 = vpop.permute.xlu0 %1939
        %1941 = vrot.lane.b32.xlu0 %v1409, 48
        %v1942 = vpop.permute.xlu0 %1941
        %1943 = vrot.lane.b32.xlu0 %v1545, 48
        %v1944 = vpop.permute.xlu0 %1943
        %1945 = vrot.lane.b32.xlu0 %v1681, 48
        %v1946 = vpop.permute.xlu0 %1945
        %1947 = vrot.lane.b32.xlu0 %v1751, 48
        %v1948 = vpop.permute.xlu0 %1947
        %1959 = vrot.lane.b32.xlu0 %v1274, 64
        %v1960 = vpop.permute.xlu0 %1959
        %1961 = vrot.lane.b32.xlu0 %v1410, 64
        %v1962 = vpop.permute.xlu0 %1961
        %1963 = vrot.lane.b32.xlu0 %v1546, 64
        %v1964 = vpop.permute.xlu0 %1963
        %1965 = vrot.lane.b32.xlu0 %v1682, 64
        %v1966 = vpop.permute.xlu0 %1965
        %1967 = vrot.lane.b32.xlu0 %v1742, 64
        %v1968 = vpop.permute.xlu0 %1967
        %1979 = vrot.lane.b32.xlu0 %v1275, 80
        %v1980 = vpop.permute.xlu0 %1979
        %1981 = vrot.lane.b32.xlu0 %v1411, 80
        %v1982 = vpop.permute.xlu0 %1981
        %1983 = vrot.lane.b32.xlu0 %v1547, 80
        %v1984 = vpop.permute.xlu0 %1983
        %1985 = vrot.lane.b32.xlu0 %v1683, 80
        %v1986 = vpop.permute.xlu0 %1985
        %1987 = vrot.lane.b32.xlu0 %v1752, 80
        %v1988 = vpop.permute.xlu0 %1987
        %1999 = vrot.lane.b32.xlu0 %v1276, 96
        %v2000 = vpop.permute.xlu0 %1999
        %2001 = vrot.lane.b32.xlu0 %v1412, 96
        %v2002 = vpop.permute.xlu0 %2001
        %2003 = vrot.lane.b32.xlu0 %v1548, 96
        %v2004 = vpop.permute.xlu0 %2003
        %2005 = vrot.lane.b32.xlu0 %v1684, 96
        %v2006 = vpop.permute.xlu0 %2005
        %2007 = vrot.lane.b32.xlu0 %v1749, 96
        %v2008 = vpop.permute.xlu0 %2007
        %2019 = vrot.lane.b32.xlu0 %v1277, 112
        %v2020 = vpop.permute.xlu0 %2019
        %2021 = vrot.lane.b32.xlu0 %v1413, 112
        %v2022 = vpop.permute.xlu0 %2021
        %2023 = vrot.lane.b32.xlu0 %v1549, 112
        %v2024 = vpop.permute.xlu0 %2023
        %2025 = vrot.lane.b32.xlu0 %v1685, 112
        %v2026 = vpop.permute.xlu0 %2025
        %2027 = vrot.lane.b32.xlu0 %v1753, 112
        %v2028 = vpop.permute.xlu0 %2027
        %vm2034 = vcmask 130048
        %v2035 = vsel %vm2034, %v658, %v1760
        %v2036 = vsel %vm2034, %v794, %v1762
        %v2037 = vsel %vm2034, %v930, %v1764
        %v2038 = vsel %vm2034, %v1066, %v1766
        %v2039 = vsel %vm2034, %v1114, %v1768
        %vm2040 = vcmask 261120
        %v2041 = vsel %vm2040, %v2035, %v1780
        %v2042 = vsel %vm2040, %v2036, %v1782
        %v2043 = vsel %vm2040, %v2037, %v1784
        %v2044 = vsel %vm2040, %v2038, %v1786
        %v2045 = vsel %vm2040, %v2039, %v1788
        %vm2046 = vcmask 392192
        %v2047 = vsel %vm2046, %v2041, %v1800
        %v2048 = vsel %vm2046, %v2042, %v1802
        %v2049 = vsel %vm2046, %v2043, %v1804
        %v2050 = vsel %vm2046, %v2044, %v1806
        %v2051 = vsel %vm2046, %v2045, %v1808
        %vm2052 = vcmask 523264
        %v2053 = vsel %vm2052, %v2047, %v1820
        %v2054 = vsel %vm2052, %v2048, %v1822
        %v2055 = vsel %vm2052, %v2049, %v1824
        %v2056 = vsel %vm2052, %v2050, %v1826
        %v2057 = vsel %vm2052, %v2051, %v1828
        %vm2058 = vcmask 654336
        %v2059 = vsel %vm2058, %v2053, %v1840
        %v2060 = vsel %vm2058, %v2054, %v1842
        %v2061 = vsel %vm2058, %v2055, %v1844
        %v2062 = vsel %vm2058, %v2056, %v1846
        %v2063 = vsel %vm2058, %v2057, %v1848
        %vm2064 = vcmask 785408
        %v2065 = vsel %vm2064, %v2059, %v1860
        %v2066 = vsel %vm2064, %v2060, %v1862
        %v2067 = vsel %vm2064, %v2061, %v1864
        %v2068 = vsel %vm2064, %v2062, %v1866
        %v2069 = vsel %vm2064, %v2063, %v1868
        %vm2070 = vcmask 916480
        %v2071 = vsel %vm2070, %v2065, %v1880
        %v2072 = vsel %vm2070, %v2066, %v1882
        %v2073 = vsel %vm2070, %v2067, %v1884
        %v2074 = vsel %vm2070, %v2068, %v1886
        %v2075 = vsel %vm2070, %v2069, %v1888
        %v2076 = vsel %vm2034, %v1270, %v1900
        %v2077 = vsel %vm2034, %v1406, %v1902
        %v2078 = vsel %vm2034, %v1542, %v1904
        %v2079 = vsel %vm2034, %v1678, %v1906
        %v2080 = vsel %vm2034, %v1726, %v1908
        %v2081 = vsel %vm2040, %v2076, %v1920
        %v2082 = vsel %vm2040, %v2077, %v1922
        %v2083 = vsel %vm2040, %v2078, %v1924
        %v2084 = vsel %vm2040, %v2079, %v1926
        %v2085 = vsel %vm2040, %v2080, %v1928
        %v2086 = vsel %vm2046, %v2081, %v1940
        %v2087 = vsel %vm2046, %v2082, %v1942
        %v2088 = vsel %vm2046, %v2083, %v1944
        %v2089 = vsel %vm2046, %v2084, %v1946
        %v2090 = vsel %vm2046, %v2085, %v1948
        %v2091 = vsel %vm2052, %v2086, %v1960
        %v2092 = vsel %vm2052, %v2087, %v1962
        %v2093 = vsel %vm2052, %v2088, %v1964
        %v2094 = vsel %vm2052, %v2089, %v1966
        %v2095 = vsel %vm2052, %v2090, %v1968
        %v2096 = vsel %vm2058, %v2091, %v1980
        %v2097 = vsel %vm2058, %v2092, %v1982
        %v2098 = vsel %vm2058, %v2093, %v1984
        %v2099 = vsel %vm2058, %v2094, %v1986
        %v2100 = vsel %vm2058, %v2095, %v1988
        %v2101 = vsel %vm2064, %v2096, %v2000
        %v2102 = vsel %vm2064, %v2097, %v2002
        %v2103 = vsel %vm2064, %v2098, %v2004
        %v2104 = vsel %vm2064, %v2099, %v2006
        %v2105 = vsel %vm2064, %v2100, %v2008
        %v2106 = vsel %vm2070, %v2101, %v2020
        %v2107 = vsel %vm2070, %v2102, %v2022
        %v2108 = vsel %vm2070, %v2103, %v2024
        %v2109 = vsel %vm2070, %v2104, %v2026
        %v2110 = vsel %vm2070, %v2105, %v2028
        %v2111 = vld [vmem:[%s1] sm:$0xff]
        %v2112 = vld [vmem:[%s1 + $0x8] sm:$0xff]
        %v2113 = vld [vmem:[%s2] sm:$0xff]
        %v2114 = vld [vmem:[%s2 + $0x8] sm:$0xff]
        %2116 = vset.pattern.permute.xlu0 0
        %2117 = vperm.xlu0 %2116, %v2113
        %v2118 = vpop.permute.xlu0 %2117
        %2121 = vset.pattern.permute.xlu0 0
        %2122 = vperm.xlu0 %2121, %v2114
        %v2123 = vpop.permute.xlu0 %2122
        %vm2125 = vcmask 293888
        %v2127 = vsel %vm2125, %v2111, 0
        %v2130 = vsel %vm2125, %v2112, 0
        %vm2132 = vcmask 1043456
        %v2134 = vsel %vm2132, %v2075, 0
        %v2137 = vsel %vm2132, %v2110, 0
        %2139 = vmatprep.subr.mxu0 %v2106
        %2140 = vmatpush1.msra.mxu0 %v2071
        %2141 = vmatprep.subr.mxu0 %v2107
        %2142 = vmatpush1.msra.mxu0 %v2072
        %2143 = vmatprep.subr.mxu0 %v2108
        %2144 = vmatpush1.msra.mxu0 %v2073
        %2145 = vmatprep.subr.mxu0 %v2109
        %2146 = vmatpush1.msra.mxu0 %v2074
        %2147 = vmatprep.subr.mxu0 %v2137
        %2148 = vmatpush1.msra.mxu0 %v2134
        %2149 = vmatprep.subr.mxu0 0.0
        %2150 = vmatpush1.msra.mxu0 0.0
        %2151 = vmatprep.subr.mxu0 0.0
        %2152 = vmatpush1.msra.mxu0 0.0
        %2153 = vmatprep.subr.mxu0 0.0
        %2154 = vmatpush1.msra.mxu0 0.0
        %2155 = vmatprep.subr.mxu0 0.0
        %2156 = vmatpush1.msra.mxu0 0.0
        %2157 = vmatprep.subr.mxu0 0.0
        %2158 = vmatpush1.msra.mxu0 0.0
        %2159 = vmatprep.subr.mxu0 0.0
        %2160 = vmatpush1.msra.mxu0 0.0
        %2161 = vmatprep.subr.mxu0 0.0
        %2162 = vmatpush1.msra.mxu0 0.0
        %2163 = vmatprep.subr.mxu0 0.0
        %2164 = vmatpush1.msra.mxu0 0.0
        %2165 = vmatprep.subr.mxu0 0.0
        %2166 = vmatpush1.msra.mxu0 0.0
        %2167 = vmatprep.subr.mxu0 0.0
        %2168 = vmatpush1.msra.mxu0 0.0
        %2169 = vmatprep.subr.mxu0 0.0
        %2170 = vmatpush1.msra.mxu0 0.0
        %2171 = vmatprep.subr.mxu0 0.0
        %2172 = vmatpush1.msra.mxu0 0.0
        %2173 = vmatprep.subr.mxu0 0.0
        %2174 = vmatpush1.msra.mxu0 0.0
        %2175 = vmatprep.subr.mxu0 0.0
        %2176 = vmatpush1.msra.mxu0 0.0
        %2177 = vmatprep.subr.mxu0 0.0
        %2178 = vmatpush1.msra.mxu0 0.0
        %2179 = vmatprep.subr.mxu0 0.0
        %2180 = vmatpush1.msra.mxu0 0.0
        %2181 = vmatprep.subr.mxu0 0.0
        %2182 = vmatpush1.msra.mxu0 0.0
        %2183 = vmatprep.subr.mxu0 0.0
        %2184 = vmatpush1.msra.mxu0 0.0
        %2185 = vmatprep.subr.mxu0 0.0
        %2186 = vmatpush1.msra.mxu0 0.0
        %2187 = vmatprep.subr.mxu0 0.0
        %2188 = vmatpush1.msra.mxu0 0.0
        %2189 = vmatprep.subr.mxu0 0.0
        %2190 = vmatpush1.msra.mxu0 0.0
        %2191 = vmatprep.subr.mxu0 0.0
        %2192 = vmatpush1.msra.mxu0 0.0
        %2193 = vmatprep.subr.mxu0 0.0
        %2194 = vmatpush1.msra.mxu0 0.0
        %2195 = vmatprep.subr.mxu0 0.0
        %2196 = vmatpush1.msra.mxu0 0.0
        %2197 = vmatprep.subr.mxu0 0.0
        %2198 = vmatpush1.msra.mxu0 0.0
        %2199 = vmatprep.subr.mxu0 0.0
        %2200 = vmatpush1.msra.mxu0 0.0
        %2201 = vmatprep.subr.mxu0 0.0
        %2202 = vmatpush1.msra.mxu0 0.0
        %2203 = vmatprep.mubr.f32.mxu0 0.0
        %2204 = vmatmul.mubr.f32.gmra.mrb[0].mxu0 %v2127
        %v2205 = vpop.f32.mrb[0].mxu0
        %v2206 = vadd.f32 %v2118, %v2205
        %v2207 = vpop.f32.mrb[0].mxu0
        %v2208 = vadd.f32 %v2118, %v2207
        %2209 = vmatprep.mubr.f32.mxu0 0.0
        %2210 = vmatmul.mubr.f32.gmra.mrb[0].mxu0 %v2130
        %v2211 = vpop.f32.mrb[0].mxu0
        %v2212 = vadd.f32 %v2123, %v2211
        %v2213 = vpop.f32.mrb[0].mxu0
        %v2214 = vadd.f32 %v2123, %v2213
        %2215 = vdwg.mxu0
        %v2216 = vmin.f32 %v2206, 0.0
        %v2217 = vmin.f32 %v2208, 0.0
        %v2218 = vmul.f32 %v2216, 1.442695
        %v2219 = vpow.pop %v2218
        %v2220 = vmul.f32 %v2217, 1.442695
        %v2221 = vpow.pop %v2220
        %v2222 = vsub.f32 %v2219, 1.0
        %v2223 = vsub.f32 %v2221, 1.0
        %vm2224 = vcmp.gt.f32.partialorder %v2206, 0.0
        %vm2225 = vcmp.gt.f32.partialorder %v2208, 0.0
        %v2226 = vsel %vm2224, %v2206, %v2222
        %v2227 = vsel %vm2225, %v2208, %v2223
        %v2228 = vxor.u32 %v2212, 2147483648
        %v2229 = vxor.u32 %v2214, 2147483648
        %v2230 = vmul.f32 %v2228, 1.442695
        %v2231 = vpow.pop %v2230
        %v2232 = vmul.f32 %v2229, 1.442695
        %v2233 = vpow.pop %v2232
        %v2234 = vadd.f32 %v2231, 1.0
        %v2235 = vadd.f32 %v2233, 1.0
        %v2236 = vrcp.pop %v2234
        %v2237 = vmul.f32 1.0, %v2236
        %v2238 = vrcp.pop %v2235
        %v2239 = vmul.f32 1.0, %v2238
        %v2240 = vmul.f32 %v2226, %v2237
        %v2241 = vmul.f32 %v2227, %v2239
        %2242 = vst [vmem:[%s188] sm:$0xff] %v2240
        %2243 = vst [vmem:[%s188 + $0x8] sm:$0xff] %v2241
        %s2244 = sand.u32 %s96, 1
        %s2245 = scalar_lea.sflag [#allocation4], %s2244
        %s2246 = sand.u32 %s96, 1
        %s2247 = smul.addr %s2246, 16
        %s2248 = scalar_lea.vmem [#allocation5], %s2247
        // Predicated region
        $region37: #{tpu_custom_call.1} parent=31 // pred_check
          %p2249 = pneg %p106
        $region38: #{tpu_custom_call.1} parent=31 // pred_check_branch
          %2251 = sbr.rel (%p2249) target = $region40
        $region39: #{tpu_custom_call.1} parent=31 // pred_region
          %s2253 = ssub.s32 256, 256
          %2254 = vsyncadd %s2245, %s2253
          %s2255 = smul.addr %s20, 2
          %s2256 = smul.addr %s2255, 128
          %s2257 = scalar_lea.hbm %s3, %s2256
          %s2259 = sshll.u32 %s2248, 4
          %s2260 = int_to_ptr.vmem [resolvable:$true] %s2259
          %2262 = dma.vmem_to_hbm [thread:$0]  %s2260, 256, %s2257, %s2245
        $region40: #{tpu_custom_call.1} parent=31 // pred_fallthru
          _
      $region32: #{tpu_custom_call.1} parent=5 // pred_fallthru
        _
      %p2263 = scmp.le.s32.totalorder 2, %s15
      // Predicated region
      $region41: #{tpu_custom_call.1} parent=5 // pred_check
        %p2264 = pneg %p2263
      $region42: #{tpu_custom_call.1} parent=5 // pred_check_branch
        %2266 = sbr.rel (%p2264) target = $region44
      $region43: #{tpu_custom_call.1} parent=5 // pred_region
        %s2267 = ssub.s32 %s15, 2
        // Predicated region
        $region45: #{tpu_custom_call.1} parent=43 // pred_check
          %p2268 = pneg %p112
        $region46: #{tpu_custom_call.1} parent=43 // pred_check_branch
          %2270 = sbr.rel (%p2268) target = $region48
        $region47: #{tpu_custom_call.1} parent=43 // pred_region
          %s2271 = sand.u32 %s97, 1
          %s2272 = scalar_lea.sflag [#allocation4], %s2271
          %s2273 = sand.u32 %s97, 1
          %s2274 = smul.addr %s2273, 16
          %s2275 = scalar_lea.vmem [#allocation5], %s2274
          %2276 = dma.done %s2272, 256
        $region48: #{tpu_custom_call.1} parent=43 // pred_fallthru
          _
      $region44: #{tpu_custom_call.1} parent=5 // pred_fallthru
        _
    $region6: #{tpu_custom_call.1} parent=1 // loop_footer
      %s19 = sadd.s32 1, %s15
    $region7: #{tpu_custom_call.1} parent=1 // loop_footer_branch
      %14 = sbr.rel target = $region3
    $region8: #{tpu_custom_call.1} parent=1 // loop_exit
      _
    %2277 = vsyncpa [#allocation3], 1
    %s2278 = scalar_lea.sflag [#allocation3], 1
    %2279 = vsyncpa %s2278, 1
    %2280 = vsyncpa [#allocation4], 1
    %s2281 = scalar_lea.sflag [#allocation4], 1
    %2282 = vsyncpa %s2281, 1

</llo_original>
